<compile_context>
chip_gen: v6e
topology: v6e:2x2x1
jax: 0.10.0
libtpu: 0.0.40
codegen_flags: <defaults>
</compile_context>

<pallas_src>
import jax
import jax.numpy as jnp
from jax.experimental import pallas as pl
from jax.experimental.pallas import tpu as pltpu


def generator_kernel(x_ref, mask_ref, w_ref, b_ref, o_ref, acc_ref, cnt_ref):
    # x_ref:    (tb, tn, D)   activations tile
    # mask_ref: (tb, tn)      mask tile (1.0 = valid token, 0.0 = padding)
    # w_ref:    (n_out, D)    Linear weight, PyTorch layout (D lane-dense)
    # b_ref:    (1, n_out)    Linear bias
    # o_ref:    (tb, n_out)   output tile (revisited across the sequence axis)
    # acc_ref:  (tb, D) f32   masked-sum accumulator (VMEM scratch)
    # cnt_ref:  (tb, 1) f32   token-count accumulator (VMEM scratch)
    seq_step = pl.program_id(1)

    @pl.when(seq_step == 0)
    def _init():
        acc_ref[...] = jnp.zeros_like(acc_ref)
        cnt_ref[...] = jnp.zeros_like(cnt_ref)

    x = x_ref[...].astype(jnp.float32)          # (tb, tn, D)
    m = mask_ref[...].astype(jnp.float32)       # (tb, tn)

    # Masked sum over this sequence tile (mask folded into the reduction; the
    # masked product only lives in vregs for the tile, never in HBM).
    acc_ref[...] += jnp.sum(x * m[:, :, None], axis=1)       # (tb, D)
    cnt_ref[...] += jnp.sum(m, axis=1, keepdims=True)        # (tb, 1)

    @pl.when(seq_step == pl.num_programs(1) - 1)
    def _finalize():
        # Masked mean.  NOTE: like the PyTorch reference, an all-zero mask row
        # yields a non-finite result (no jnp.maximum guard, to keep semantics).
        pooled = acc_ref[...] * pl.reciprocal(cnt_ref[...], approx=True)
        # Linear(d_model, n_out) as a VPU broadcast-multiply + lane reduction
        # over D (avoids a degenerate (tb,D)@(D,1) MXU pass in the epilogue).
        proj = jnp.sum(pooled[:, None, :] * w_ref[...][None, :, :], axis=-1)
        o_ref[...] = (proj + b_ref[...]).astype(o_ref.dtype)


def _pick_tiles(B, N, D, itemsize, vmem_budget_bytes=8 * 1024 * 1024):
    """Pick (tb, tn) respecting the (8,128)/full-dim block rule and a VMEM budget
    small enough for double-buffering on every TPU generation (incl. v7x)."""
    tb = 8 if (B % 8 == 0 and B > 8) else B
    if N % 128 == 0 and N > 128:
        max_tn = max(128, vmem_budget_bytes // (2 * tb * D * itemsize))
        tn = min(N, (max_tn // 128) * 128)
        while N % tn != 0:
            tn -= 128
        tn = max(tn, 128)
    else:
        tn = N
    return tb, tn


def generator_forward(x, mask, weight, bias, *, tb=None, tn=None):
    """x: (B, N, D); mask: (B, N); weight: (n_out, D) [PyTorch layout]; bias: (n_out,)."""
    B, N, D = x.shape
    n_out, d_w = weight.shape
    assert d_w == D, (weight.shape, D)

    auto_tb, auto_tn = _pick_tiles(B, N, D, jnp.dtype(x.dtype).itemsize)
    tb = auto_tb if tb is None else tb
    tn = auto_tn if tn is None else tn
    assert B % tb == 0 and N % tn == 0, (B, N, tb, tn)

    w = weight.astype(jnp.float32)
    b2d = bias.astype(jnp.float32).reshape(1, n_out)

    grid = (B // tb, N // tn)

    x_bytes = B * N * D * jnp.dtype(x.dtype).itemsize
    m_bytes = B * N * jnp.dtype(mask.dtype).itemsize
    cost = pl.CostEstimate(
        flops=2 * B * N * D + 2 * B * D * n_out,
        transcendentals=B,
        bytes_accessed=x_bytes + m_bytes + B * n_out * 4 + (n_out * D + n_out) * 4,
    )

    return pl.pallas_call(
        generator_kernel,
        out_shape=jax.ShapeDtypeStruct((B, n_out), jnp.float32),
        grid_spec=pltpu.PrefetchScalarGridSpec(
            num_scalar_prefetch=0,
            grid=grid,
            in_specs=[
                pl.BlockSpec((tb, tn, D), lambda bi, ni: (bi, ni, 0)),  # x (streamed)
                pl.BlockSpec((tb, tn), lambda bi, ni: (bi, ni)),        # mask (streamed)
                pl.BlockSpec((n_out, D), lambda bi, ni: (0, 0)),        # W  (resident)
                pl.BlockSpec((1, n_out), lambda bi, ni: (0, 0)),        # b  (resident)
            ],
            out_specs=pl.BlockSpec((tb, n_out), lambda bi, ni: (bi, 0)),
            scratch_shapes=[
                pltpu.VMEM((tb, D), jnp.float32),   # masked-sum accumulator
                pltpu.VMEM((tb, 1), jnp.float32),   # token-count accumulator
            ],
        ),
        compiler_params=pltpu.CompilerParams(
            dimension_semantics=("parallel", "arbitrary"),
            vmem_limit_bytes=32 * 1024 * 1024,
        ),
        cost_estimate=cost,
    )(x, mask, w, b2d)


def generator_reference(x, mask, weight, bias):
    m = mask.astype(jnp.float32)[..., None]
    out_sum = (x.astype(jnp.float32) * m).sum(axis=1)
    mask_sum = m.sum(axis=1)
    pooled = out_sum / mask_sum
    return pooled @ weight.astype(jnp.float32).T + bias.astype(jnp.float32)[None, :]


if __name__ == "__main__":
    # Small but non-trivial shapes: tb=8, tn=128 -> grid (2, 2) exercises both the
    # batch-parallel axis and the sequence accumulation (init/finalize) path.
    B, N, D, n_output = 16, 256, 32, 1
    tb, tn = 8, 128

    key = jax.random.PRNGKey(0)
    kx, kl, kw, kb = jax.random.split(key, 4)

    x = jax.random.normal(kx, (B, N, D), dtype=jnp.float32)

    # Deterministic per-row valid-token counts (>= 16, so no all-zero rows).
    lengths = jax.random.randint(kl, (B,), 16, N + 1)
    mask = (jnp.arange(N)[None, :] < lengths[:, None]).astype(jnp.float32)

    # Deterministic Linear(d_model, n_output) params in PyTorch (n_out, D) layout.
    bound = 1.0 / jnp.sqrt(jnp.float32(D))
    weight = jax.random.uniform(kw, (n_output, D), jnp.float32, -bound, bound)
    bias = jax.random.uniform(kb, (n_output,), jnp.float32, -bound, bound)

    out = generator_forward(x, mask, weight, bias, tb=tb, tn=tn)
    out = jax.block_until_ready(out)

    ref = generator_reference(x, mask, weight, bias)
    assert out.shape == (B, n_output)
    # Tolerance loosened slightly vs exact divide because of the approximate
    # (EUP) reciprocal used for the masked mean.
    assert jnp.allclose(out, ref, atol=2e-3, rtol=2e-3), (out, ref)

    # TODO(synk): 'gru' aggregation (nn.GRU + extra Linear) and the n_layers>1
    # MLP head (Mish/LayerNorm/Dropout stack) are not exercised by the default
    # config and have no clean single-Pallas-kernel equivalent here.
    print("KERNEL_OK")
</pallas_src>

<mosaic_0001>
module attributes {stable_mosaic.version = 11 : i64} {
  func.func @generator_kernel(%arg0: i32, %arg1: i32, %arg2: memref<8x128x32xf32, #tpu.memory_space<vmem>>, %arg3: memref<8x128xf32, #tpu.memory_space<vmem>>, %arg4: memref<1x32xf32, #tpu.memory_space<vmem>>, %arg5: memref<1x1xf32, #tpu.memory_space<vmem>>, %arg6: memref<8x1xf32, #tpu.memory_space<vmem>>, %arg7: memref<8x32xf32, #tpu.memory_space<vmem>>, %arg8: memref<8x1xf32, #tpu.memory_space<vmem>>) attributes {dimension_semantics = [#tpu.dimension_semantics<parallel>, #tpu.dimension_semantics<arbitrary>], iteration_bounds = array<i64: 2, 2>, scalar_prefetch = 0 : i64, scratch_operands = 2 : i64, tpu.core_type = #tpu.core_type<tc>, window_params = [{transform_indices = @transform_0, window_bounds = array<i64: 8, 128, 32>}, {transform_indices = @transform_1, window_bounds = array<i64: 8, 128>}, {pipeline_mode = #tpu.pipeline_mode<synchronous>, transform_indices = @transform_2, window_bounds = array<i64: 1, 32>}, {pipeline_mode = #tpu.pipeline_mode<synchronous>, transform_indices = @transform_3, window_bounds = array<i64: 1, 1>}, {transform_indices = @transform_4, window_bounds = array<i64: 8, 1>}]} {
    %c0_i32 = arith.constant 0 : i32
    %0 = arith.cmpi eq, %arg1, %c0_i32 : i32
    %1 = arith.extui %0 : i1 to i32
    %c0_i32_0 = arith.constant 0 : i32
    %2 = arith.cmpi ne, %1, %c0_i32_0 : i32
    scf.if %2 {
      %cst_15 = arith.constant 0.000000e+00 : f32
      %20 = vector.broadcast %cst_15 : f32 to vector<8x32xf32>
      %c0_16 = arith.constant 0 : index
      %c0_17 = arith.constant 0 : index
      %21 = vector.load %arg7[%c0_16, %c0_17] : memref<8x32xf32, #tpu.memory_space<vmem>>, vector<8x32xf32>
      tpu.vector_store %arg7[%c0_16, %c0_17], %20 {strides = array<i32>} : memref<8x32xf32, #tpu.memory_space<vmem>>, vector<8x32xf32>,
      %cst_18 = arith.constant 0.000000e+00 : f32
      %22 = vector.broadcast %cst_18 : f32 to vector<8x1xf32>
      %c0_19 = arith.constant 0 : index
      %c0_20 = arith.constant 0 : index
      %23 = vector.load %arg8[%c0_19, %c0_20] : memref<8x1xf32, #tpu.memory_space<vmem>>, vector<8x1xf32>
      tpu.vector_store %arg8[%c0_19, %c0_20], %22 {strides = array<i32>} : memref<8x1xf32, #tpu.memory_space<vmem>>, vector<8x1xf32>,
    } else {
    }
    %c0 = arith.constant 0 : index
    %c0_1 = arith.constant 0 : index
    %c0_2 = arith.constant 0 : index
    %3 = vector.load %arg2[%c0, %c0_1, %c0_2] : memref<8x128x32xf32, #tpu.memory_space<vmem>>, vector<8x128x32xf32>
    %c0_3 = arith.constant 0 : index
    %c0_4 = arith.constant 0 : index
    %4 = vector.load %arg3[%c0_3, %c0_4] : memref<8x128xf32, #tpu.memory_space<vmem>>, vector<8x128xf32>
    %c0_5 = arith.constant 0 : index
    %c0_6 = arith.constant 0 : index
    %5 = vector.load %arg7[%c0_5, %c0_6] : memref<8x32xf32, #tpu.memory_space<vmem>>, vector<8x32xf32>
    %6 = vector.shape_cast %4 : vector<8x128xf32> to vector<8x128x1xf32>
    %7 = vector.broadcast %6 : vector<8x128x1xf32> to vector<8x128x32xf32>
    %8 = arith.mulf %3, %7 : vector<8x128x32xf32>
    %cst = arith.constant dense<0.000000e+00> : vector<8x32xf32>
    %9 = vector.multi_reduction <add>, %8, %cst [1] : vector<8x128x32xf32> to vector<8x32xf32>
    %10 = arith.addf %5, %9 : vector<8x32xf32>
    %c0_7 = arith.constant 0 : index
    %c0_8 = arith.constant 0 : index
    %11 = vector.load %arg7[%c0_7, %c0_8] : memref<8x32xf32, #tpu.memory_space<vmem>>, vector<8x32xf32>
    tpu.vector_store %arg7[%c0_7, %c0_8], %10 {strides = array<i32>} : memref<8x32xf32, #tpu.memory_space<vmem>>, vector<8x32xf32>,
    %c0_9 = arith.constant 0 : index
    %c0_10 = arith.constant 0 : index
    %12 = vector.load %arg8[%c0_9, %c0_10] : memref<8x1xf32, #tpu.memory_space<vmem>>, vector<8x1xf32>
    %cst_11 = arith.constant dense<0.000000e+00> : vector<8xf32>
    %13 = vector.multi_reduction <add>, %4, %cst_11 [1] : vector<8x128xf32> to vector<8xf32>
    %14 = vector.shape_cast %13 : vector<8xf32> to vector<8x1xf32>
    %15 = arith.addf %12, %14 : vector<8x1xf32>
    %c0_12 = arith.constant 0 : index
    %c0_13 = arith.constant 0 : index
    %16 = vector.load %arg8[%c0_12, %c0_13] : memref<8x1xf32, #tpu.memory_space<vmem>>, vector<8x1xf32>
    tpu.vector_store %arg8[%c0_12, %c0_13], %15 {strides = array<i32>} : memref<8x1xf32, #tpu.memory_space<vmem>>, vector<8x1xf32>,
    %c1_i32 = arith.constant 1 : i32
    %17 = arith.cmpi eq, %arg1, %c1_i32 : i32
    %18 = arith.extui %17 : i1 to i32
    %c0_i32_14 = arith.constant 0 : i32
    %19 = arith.cmpi ne, %18, %c0_i32_14 : i32
    scf.if %19 {
      %c0_15 = arith.constant 0 : index
      %c0_16 = arith.constant 0 : index
      %20 = vector.load %arg7[%c0_15, %c0_16] : memref<8x32xf32, #tpu.memory_space<vmem>>, vector<8x32xf32>
      %c0_17 = arith.constant 0 : index
      %c0_18 = arith.constant 0 : index
      %21 = vector.load %arg8[%c0_17, %c0_18] : memref<8x1xf32, #tpu.memory_space<vmem>>, vector<8x1xf32>
      %22 = tpu.reciprocal %21 {approx = true} : vector<8x1xf32> -> vector<8x1xf32>
      %23 = vector.broadcast %22 : vector<8x1xf32> to vector<8x32xf32>
      %24 = arith.mulf %20, %23 : vector<8x32xf32>
      %25 = vector.shape_cast %24 : vector<8x32xf32> to vector<8x1x32xf32>
      %c0_19 = arith.constant 0 : index
      %c0_20 = arith.constant 0 : index
      %26 = vector.load %arg4[%c0_19, %c0_20] : memref<1x32xf32, #tpu.memory_space<vmem>>, vector<1x32xf32>
      %27 = vector.shape_cast %26 : vector<1x32xf32> to vector<1x1x32xf32>
      %28 = vector.broadcast %27 : vector<1x1x32xf32> to vector<8x1x32xf32>
      %29 = arith.mulf %25, %28 : vector<8x1x32xf32>
      %cst_21 = arith.constant dense<0.000000e+00> : vector<8x1xf32>
      %30 = vector.multi_reduction <add>, %29, %cst_21 [2] : vector<8x1x32xf32> to vector<8x1xf32>
      %c0_22 = arith.constant 0 : index
      %c0_23 = arith.constant 0 : index
      %31 = vector.load %arg5[%c0_22, %c0_23] : memref<1x1xf32, #tpu.memory_space<vmem>>, vector<1x1xf32>
      %32 = vector.broadcast %31 : vector<1x1xf32> to vector<8x1xf32>
      %33 = arith.addf %30, %32 : vector<8x1xf32>
      %c0_24 = arith.constant 0 : index
      %c0_25 = arith.constant 0 : index
      %34 = vector.load %arg6[%c0_24, %c0_25] : memref<8x1xf32, #tpu.memory_space<vmem>>, vector<8x1xf32>
      tpu.vector_store %arg6[%c0_24, %c0_25], %33 {strides = array<i32>} : memref<8x1xf32, #tpu.memory_space<vmem>>, vector<8x1xf32>,
    } else {
    }
    return
  }
  func.func @transform_0(%arg0: i32, %arg1: i32) -> (i32, i32, i32) {
    %c0_i32 = arith.constant 0 : i32
    %c0_i32_0 = arith.constant 0 : i32
    return %arg0, %arg1, %c0_i32 : i32, i32, i32
  }
  func.func @transform_1(%arg0: i32, %arg1: i32) -> (i32, i32) {
    %c0_i32 = arith.constant 0 : i32
    return %arg0, %arg1 : i32, i32
  }
  func.func @transform_2(%arg0: i32, %arg1: i32) -> (i32, i32) {
    %c0_i32 = arith.constant 0 : i32
    %c0_i32_0 = arith.constant 0 : i32
    %c0_i32_1 = arith.constant 0 : i32
    return %c0_i32, %c0_i32_0 : i32, i32
  }
  func.func @transform_3(%arg0: i32, %arg1: i32) -> (i32, i32) {
    %c0_i32 = arith.constant 0 : i32
    %c0_i32_0 = arith.constant 0 : i32
    %c0_i32_1 = arith.constant 0 : i32
    return %c0_i32, %c0_i32_0 : i32, i32
  }
  func.func @transform_4(%arg0: i32, %arg1: i32) -> (i32, i32) {
    %c0_i32 = arith.constant 0 : i32
    %c0_i32_0 = arith.constant 0 : i32
    return %arg0, %c0_i32 : i32, i32
  }
}

</mosaic_0001>

<llo_original>
// kernel: tpu_custom_call.1
$region0: #{tpu_custom_call.1}
  #allocation0 [shape = 'u32[]', space=smem, size = 0x4, offset = 0x4, fixed_abs, tag = 'smem constant byte address 0x4 - core index']
  #allocation1 [shape = 'u32[144,128]{1,0:T(1,128)}', space=vmem, size = 0x12000, scoped, tag = 'internal scratch']
  #allocation2 [shape = 'f32[8,32]{1,0:T(8,128)}', space=vmem, size = 0x1000, scoped, tag = 'scratch operand']
  #allocation3 [shape = 'f32[8,1]{1,0:T(8,128)}', space=vmem, size = 0x1000, scoped, tag = 'scratch operand']
  #allocation4 [shape = 'f32[1,1]{1,0:T(1,128)S(1)}', space=vmem, size = 0x200, scoped, tag = 'scoped memory for tpu_custom_call.1']
  %s0 = inlined_call_operand.vmem [shape: f32[16,256,32], index: 0, kind: input, shape index: {}]
  %s1 = inlined_call_operand.vmem [shape: f32[16,256], index: 1, kind: input, shape index: {}]
  %s2 = inlined_call_operand.vmem [shape: f32[1,32], index: 2, kind: input, shape index: {}]
  %s3 = inlined_call_operand.<no memory space> [shape: f32[1,1], index: 3, kind: input, shape index: {}]
  %s4 = inlined_call_operand.vmem [shape: f32[16,1], index: 4, kind: output, shape index: {}]
  %s5 = sld [smem:[#allocation0]]
  $region95: #{tpu_custom_call.1} parent=0
    _
  %s7 = ssub.s32 1, %s5
  %s8 = scalar_select 0, %s7, %s5
  %v9 = vstv %s3
  %10 = vst [vmem:[#allocation4] sm:$0x1] %v9
  $region1: #{tpu_custom_call.1} parent=0
    #allocation5 [shape = 'u8[1048576]{0}', space=vmem, size = 0x100000, scoped, tag = 'input window, operand 0']
    loop: start=0, step=1, limit=6
    $region2: #{tpu_custom_call.1} parent=1 // loop_pre_header
      _
    $region3: #{tpu_custom_call.1} parent=1 // loop_header
      %s12 = sphi 0, %s16
      %p13 = scmp.ge.s32.totalorder %s12, 6
      %s19 = sphi 0, %s31
      %s20 = sphi 0, %s27
      %s21 = sphi 0, %s19
      %s22 = sphi 0, %s20
      %s23 = sphi 0, %s21
      %s24 = sphi 0, %s22
      %s36 = sphi 0, %s38
      %s39 = sphi 0, %s36
      %s40 = sphi 0, %s39
      %s56 = sphi 0, %s40
      %s64 = sphi 0, %s66
      %s67 = sphi 0, %s64
      %s68 = sphi 0, %s67
      %s84 = sphi 0, %s68
      %s88 = sphi 0, %s88
      %s90 = sphi 0, %s88
      %s91 = sphi 0, %s90
      %s105 = sphi 0, %s91
      %s109 = sphi 0, %s109
      %s111 = sphi 0, %s109
      %s112 = sphi 0, %s111
      %s126 = sphi 0, %s112
      %s132 = sphi 0, %s134
      %s135 = sphi 0, %s132
      %s136 = sphi 0, %s135
      %s152 = sphi 0, %s136
    $region4: #{tpu_custom_call.1} parent=1 // loop_header_branch
      %15 = sbr.rel (%p13) target = $region8
    $region5: #{tpu_custom_call.1} parent=1 // loop_body
      %s17 = ssub.s32 %s12, 1
      %s18 = ssub.s32 %s12, 2
      %s25 = sadd.s32 1, %s20
      %p26 = scmp.ge.s32.totalorder %s25, 2
      %s27 = scalar_select %p26, 0, %s25
      %s28 = sadd.s32 1, %s19
      %s29 = scalar_select %p26, %s28, %s19
      %p30 = scmp.ge.s32.totalorder %s29, 2
      %s31 = scalar_select %p30, 0, %s29
      %s32 = ssub.s32 %s19, %s31
      %s33 = ssub.s32 %s20, %s27
      %s34 = sor.u32 %s32, %s33
      %p35 = scmp.eq.s32.totalorder %s34, 0
      %s37 = sadd.s32 %s36, 1
      %s38 = scalar_select %p35, %s36, %s37
      %p41 = pneg %p35
      %p42 = scmp.eq.s32.totalorder %s12, 3
      %p43 = por %p41, %p42
      %p44 = scmp.ne.s32.totalorder %s36, %s39
      %p45 = scmp.eq.s32.totalorder %s12, 0
      %p46 = por %p44, %p45
      %p47 = scmp.ne.s32.totalorder %s36, %s39
      %p48 = scmp.eq.s32.totalorder %s17, 3
      %p49 = por %p47, %p48
      %p50 = scmp.ne.s32.totalorder %s39, %s40
      %p51 = scmp.eq.s32.totalorder %s17, 0
      %p52 = por %p50, %p51
      %p53 = scmp.ne.s32.totalorder %s39, %s40
      %p54 = scmp.eq.s32.totalorder %s18, 3
      %p55 = por %p53, %p54
      %p57 = scmp.ne.s32.totalorder %s40, %s56
      %p58 = scmp.eq.s32.totalorder %s18, 0
      %p59 = por %p57, %p58
      %s60 = ssub.s32 %s19, %s31
      %s61 = ssub.s32 %s20, %s27
      %s62 = sor.u32 %s60, %s61
      %p63 = scmp.eq.s32.totalorder %s62, 0
      %s65 = sadd.s32 %s64, 1
      %s66 = scalar_select %p63, %s64, %s65
      %p69 = pneg %p63
      %p70 = scmp.eq.s32.totalorder %s12, 3
      %p71 = por %p69, %p70
      %p72 = scmp.ne.s32.totalorder %s64, %s67
      %p73 = scmp.eq.s32.totalorder %s12, 0
      %p74 = por %p72, %p73
      %p75 = scmp.ne.s32.totalorder %s64, %s67
      %p76 = scmp.eq.s32.totalorder %s17, 3
      %p77 = por %p75, %p76
      %p78 = scmp.ne.s32.totalorder %s67, %s68
      %p79 = scmp.eq.s32.totalorder %s17, 0
      %p80 = por %p78, %p79
      %p81 = scmp.ne.s32.totalorder %s67, %s68
      %p82 = scmp.eq.s32.totalorder %s18, 3
      %p83 = por %p81, %p82
      %p85 = scmp.ne.s32.totalorder %s68, %s84
      %p86 = scmp.eq.s32.totalorder %s18, 0
      %p87 = por %p85, %p86
      %s89 = sadd.s32 %s88, 1
      %p92 = scmp.eq.s32.totalorder %s12, 3
      %p93 = scmp.ne.s32.totalorder %s88, %s90
      %p94 = scmp.eq.s32.totalorder %s12, 0
      %p95 = por %p93, %p94
      %p96 = scmp.ne.s32.totalorder %s88, %s90
      %p97 = scmp.eq.s32.totalorder %s17, 3
      %p98 = por %p96, %p97
      %p99 = scmp.ne.s32.totalorder %s90, %s91
      %p100 = scmp.eq.s32.totalorder %s17, 0
      %p101 = por %p99, %p100
      %p102 = scmp.ne.s32.totalorder %s90, %s91
      %p103 = scmp.eq.s32.totalorder %s18, 3
      %p104 = por %p102, %p103
      %p106 = scmp.ne.s32.totalorder %s91, %s105
      %p107 = scmp.eq.s32.totalorder %s18, 0
      %p108 = por %p106, %p107
      %s110 = sadd.s32 %s109, 1
      %p113 = scmp.eq.s32.totalorder %s12, 3
      %p114 = scmp.ne.s32.totalorder %s109, %s111
      %p115 = scmp.eq.s32.totalorder %s12, 0
      %p116 = por %p114, %p115
      %p117 = scmp.ne.s32.totalorder %s109, %s111
      %p118 = scmp.eq.s32.totalorder %s17, 3
      %p119 = por %p117, %p118
      %p120 = scmp.ne.s32.totalorder %s111, %s112
      %p121 = scmp.eq.s32.totalorder %s17, 0
      %p122 = por %p120, %p121
      %p123 = scmp.ne.s32.totalorder %s111, %s112
      %p124 = scmp.eq.s32.totalorder %s18, 3
      %p125 = por %p123, %p124
      %p127 = scmp.ne.s32.totalorder %s112, %s126
      %p128 = scmp.eq.s32.totalorder %s18, 0
      %p129 = por %p127, %p128
      %s130 = ssub.s32 %s19, %s31
      %p131 = scmp.eq.s32.totalorder %s130, 0
      %s133 = sadd.s32 %s132, 1
      %s134 = scalar_select %p131, %s132, %s133
      %p137 = pneg %p131
      %p138 = scmp.eq.s32.totalorder %s12, 3
      %p139 = por %p137, %p138
      %p140 = scmp.ne.s32.totalorder %s132, %s135
      %p141 = scmp.eq.s32.totalorder %s12, 0
      %p142 = por %p140, %p141
      %p143 = scmp.ne.s32.totalorder %s132, %s135
      %p144 = scmp.eq.s32.totalorder %s17, 3
      %p145 = por %p143, %p144
      %p146 = scmp.ne.s32.totalorder %s135, %s136
      %p147 = scmp.eq.s32.totalorder %s17, 0
      %p148 = por %p146, %p147
      %p149 = scmp.ne.s32.totalorder %s135, %s136
      %p150 = scmp.eq.s32.totalorder %s18, 3
      %p151 = por %p149, %p150
      %p153 = scmp.ne.s32.totalorder %s136, %s152
      %p154 = scmp.eq.s32.totalorder %s18, 0
      %p155 = por %p153, %p154
      %p156 = scmp.le.s32.totalorder 1, %s12
      %p157 = scmp.lt.s32.totalorder %s12, 5
      %p158 = pnand %p156, %p157
      %p159 = pneg %p158
      // Predicated region
      $region9: #{tpu_custom_call.1} parent=5 // pred_check
        _
      $region10: #{tpu_custom_call.1} parent=5 // pred_check_branch
        %161 = sbr.rel (%p158) target = $region12
      $region11: #{tpu_custom_call.1} parent=5 // pred_region
        %s162 = ssub.s32 %s12, 1
        // Predicated region
        $region13: #{tpu_custom_call.1} parent=11 // pred_check
          %p163 = pneg %p101
        $region14: #{tpu_custom_call.1} parent=11 // pred_check_branch
          %165 = sbr.rel (%p163) target = $region16
        $region15: #{tpu_custom_call.1} parent=11 // pred_region
          _
        $region16: #{tpu_custom_call.1} parent=11 // pred_fallthru
          _
        // Predicated region
        $region17: #{tpu_custom_call.1} parent=11 // pred_check
          %p166 = pneg %p122
        $region18: #{tpu_custom_call.1} parent=11 // pred_check_branch
          %168 = sbr.rel (%p166) target = $region20
        $region19: #{tpu_custom_call.1} parent=11 // pred_region
          _
        $region20: #{tpu_custom_call.1} parent=11 // pred_fallthru
          _
      $region12: #{tpu_custom_call.1} parent=5 // pred_fallthru
        _
      %p169 = scmp.lt.s32.totalorder %s12, 4
      // Predicated region
      $region21: #{tpu_custom_call.1} parent=5 // pred_check
        %p170 = pneg %p169
      $region22: #{tpu_custom_call.1} parent=5 // pred_check_branch
        %172 = sbr.rel (%p170) target = $region24
      $region23: #{tpu_custom_call.1} parent=5 // pred_region
        // Predicated region
        $region25: #{tpu_custom_call.1} parent=23 // pred_check
          %p173 = pneg %p46
        $region26: #{tpu_custom_call.1} parent=23 // pred_check_branch
          %175 = sbr.rel (%p173) target = $region28
        $region27: #{tpu_custom_call.1} parent=23 // pred_region
          %s176 = sand.u32 %s36, 1
          %s177 = sand.u32 %s36, 1
          %s178 = smul.addr %s177, 1024
          %s179 = scalar_lea.vmem [#allocation5], %s178
          %s180 = smul.u32 8, %s19
          %s181 = smul.u32 16, %s20
          %s182 = smul.addr %s180, 32
          %s183 = sadd.s32 %s181, %s182
          %s184 = smul.addr %s183, 8
          %s185 = scalar_lea.vmem %s0, %s184
          // Predicated region
          $region29: #{tpu_custom_call.1} parent=27 // pred_check
            _
          $region30: #{tpu_custom_call.1} parent=27 // pred_check_branch
            %187 = sbr.rel (0) target = $region32
          $region31: #{tpu_custom_call.1} parent=27 // pred_region
            // Predicated region
            $region33: #{tpu_custom_call.1} parent=31 // pred_check
              _
            $region34: #{tpu_custom_call.1} parent=31 // pred_check_branch
              %189 = sbr.rel (0) target = $region36
            $region35: #{tpu_custom_call.1} parent=31 // pred_region
              // Predicated region
              $region48: #{tpu_custom_call.1} parent=35 // pred_check
                _
              $region49: #{tpu_custom_call.1} parent=35 // pred_check_branch
                %459 = sbr.rel (0) target = $region51
              $region50: #{tpu_custom_call.1} parent=35 // pred_region
                loop: start=0, step=1, limit=1
                $region52: #{tpu_custom_call.1} parent=50 // loop_pre_header
                  _
                $region53: #{tpu_custom_call.1} parent=50 // loop_header
                  %s461 = sphi 0, %s465
                  %p462 = scmp.ge.s32.totalorder %s461, 1
                  %s466 = sphi %s185, %s185
                  %s467 = sphi %s179, %s179
                $region54: #{tpu_custom_call.1} parent=50 // loop_header_branch
                  %464 = sbr.rel (%p462) target = $region58
                $region55: #{tpu_custom_call.1} parent=50 // loop_body
                  %v468 = vld [vmem:[%s466] sm:$0xff]
                  %469 = vst [vmem:[%s467] sm:$0xff] %v468
                  %v470 = vld [vmem:[%s466 + $0x8] sm:$0xff]
                  %471 = vst [vmem:[%s467 + $0x8] sm:$0xff] %v470
                  %v472 = vld [vmem:[%s466 + $0x10] sm:$0xff]
                  %473 = vst [vmem:[%s467 + $0x10] sm:$0xff] %v472
                  %v474 = vld [vmem:[%s466 + $0x18] sm:$0xff]
                  %475 = vst [vmem:[%s467 + $0x18] sm:$0xff] %v474
                  %v476 = vld [vmem:[%s466 + $0x20] sm:$0xff]
                  %477 = vst [vmem:[%s467 + $0x20] sm:$0xff] %v476
                  %v478 = vld [vmem:[%s466 + $0x28] sm:$0xff]
                  %479 = vst [vmem:[%s467 + $0x28] sm:$0xff] %v478
                  %v480 = vld [vmem:[%s466 + $0x30] sm:$0xff]
                  %481 = vst [vmem:[%s467 + $0x30] sm:$0xff] %v480
                  %v482 = vld [vmem:[%s466 + $0x38] sm:$0xff]
                  %483 = vst [vmem:[%s467 + $0x38] sm:$0xff] %v482
                  %v484 = vld [vmem:[%s466 + $0x40] sm:$0xff]
                  %485 = vst [vmem:[%s467 + $0x40] sm:$0xff] %v484
                  %v486 = vld [vmem:[%s466 + $0x48] sm:$0xff]
                  %487 = vst [vmem:[%s467 + $0x48] sm:$0xff] %v486
                  %v488 = vld [vmem:[%s466 + $0x50] sm:$0xff]
                  %489 = vst [vmem:[%s467 + $0x50] sm:$0xff] %v488
                  %v490 = vld [vmem:[%s466 + $0x58] sm:$0xff]
                  %491 = vst [vmem:[%s467 + $0x58] sm:$0xff] %v490
                  %v492 = vld [vmem:[%s466 + $0x60] sm:$0xff]
                  %493 = vst [vmem:[%s467 + $0x60] sm:$0xff] %v492
                  %v494 = vld [vmem:[%s466 + $0x68] sm:$0xff]
                  %495 = vst [vmem:[%s467 + $0x68] sm:$0xff] %v494
                  %v496 = vld [vmem:[%s466 + $0x70] sm:$0xff]
                  %497 = vst [vmem:[%s467 + $0x70] sm:$0xff] %v496
                  %v498 = vld [vmem:[%s466 + $0x78] sm:$0xff]
                  %499 = vst [vmem:[%s467 + $0x78] sm:$0xff] %v498
                  %v500 = vld [vmem:[%s466 + $0x100] sm:$0xff]
                  %501 = vst [vmem:[%s467 + $0x80] sm:$0xff] %v500
                  %v502 = vld [vmem:[%s466 + $0x108] sm:$0xff]
                  %503 = vst [vmem:[%s467 + $0x88] sm:$0xff] %v502
                  %v504 = vld [vmem:[%s466 + $0x110] sm:$0xff]
                  %505 = vst [vmem:[%s467 + $0x90] sm:$0xff] %v504
                  %v506 = vld [vmem:[%s466 + $0x118] sm:$0xff]
                  %507 = vst [vmem:[%s467 + $0x98] sm:$0xff] %v506
                  %v508 = vld [vmem:[%s466 + $0x120] sm:$0xff]
                  %509 = vst [vmem:[%s467 + $0xa0] sm:$0xff] %v508
                  %v510 = vld [vmem:[%s466 + $0x128] sm:$0xff]
                  %511 = vst [vmem:[%s467 + $0xa8] sm:$0xff] %v510
                  %v512 = vld [vmem:[%s466 + $0x130] sm:$0xff]
                  %513 = vst [vmem:[%s467 + $0xb0] sm:$0xff] %v512
                  %v514 = vld [vmem:[%s466 + $0x138] sm:$0xff]
                  %515 = vst [vmem:[%s467 + $0xb8] sm:$0xff] %v514
                  %v516 = vld [vmem:[%s466 + $0x140] sm:$0xff]
                  %517 = vst [vmem:[%s467 + $0xc0] sm:$0xff] %v516
                  %v518 = vld [vmem:[%s466 + $0x148] sm:$0xff]
                  %519 = vst [vmem:[%s467 + $0xc8] sm:$0xff] %v518
                  %v520 = vld [vmem:[%s466 + $0x150] sm:$0xff]
                  %521 = vst [vmem:[%s467 + $0xd0] sm:$0xff] %v520
                  %v522 = vld [vmem:[%s466 + $0x158] sm:$0xff]
                  %523 = vst [vmem:[%s467 + $0xd8] sm:$0xff] %v522
                  %v524 = vld [vmem:[%s466 + $0x160] sm:$0xff]
                  %525 = vst [vmem:[%s467 + $0xe0] sm:$0xff] %v524
                  %v526 = vld [vmem:[%s466 + $0x168] sm:$0xff]
                  %527 = vst [vmem:[%s467 + $0xe8] sm:$0xff] %v526
                  %v528 = vld [vmem:[%s466 + $0x170] sm:$0xff]
                  %529 = vst [vmem:[%s467 + $0xf0] sm:$0xff] %v528
                  %v530 = vld [vmem:[%s466 + $0x178] sm:$0xff]
                  %531 = vst [vmem:[%s467 + $0xf8] sm:$0xff] %v530
                  %v532 = vld [vmem:[%s466 + $0x200] sm:$0xff]
                  %533 = vst [vmem:[%s467 + $0x100] sm:$0xff] %v532
                  %v534 = vld [vmem:[%s466 + $0x208] sm:$0xff]
                  %535 = vst [vmem:[%s467 + $0x108] sm:$0xff] %v534
                  %v536 = vld [vmem:[%s466 + $0x210] sm:$0xff]
                  %537 = vst [vmem:[%s467 + $0x110] sm:$0xff] %v536
                  %v538 = vld [vmem:[%s466 + $0x218] sm:$0xff]
                  %539 = vst [vmem:[%s467 + $0x118] sm:$0xff] %v538
                  %v540 = vld [vmem:[%s466 + $0x220] sm:$0xff]
                  %541 = vst [vmem:[%s467 + $0x120] sm:$0xff] %v540
                  %v542 = vld [vmem:[%s466 + $0x228] sm:$0xff]
                  %543 = vst [vmem:[%s467 + $0x128] sm:$0xff] %v542
                  %v544 = vld [vmem:[%s466 + $0x230] sm:$0xff]
                  %545 = vst [vmem:[%s467 + $0x130] sm:$0xff] %v544
                  %v546 = vld [vmem:[%s466 + $0x238] sm:$0xff]
                  %547 = vst [vmem:[%s467 + $0x138] sm:$0xff] %v546
                  %v548 = vld [vmem:[%s466 + $0x240] sm:$0xff]
                  %549 = vst [vmem:[%s467 + $0x140] sm:$0xff] %v548
                  %v550 = vld [vmem:[%s466 + $0x248] sm:$0xff]
                  %551 = vst [vmem:[%s467 + $0x148] sm:$0xff] %v550
                  %v552 = vld [vmem:[%s466 + $0x250] sm:$0xff]
                  %553 = vst [vmem:[%s467 + $0x150] sm:$0xff] %v552
                  %v554 = vld [vmem:[%s466 + $0x258] sm:$0xff]
                  %555 = vst [vmem:[%s467 + $0x158] sm:$0xff] %v554
                  %v556 = vld [vmem:[%s466 + $0x260] sm:$0xff]
                  %557 = vst [vmem:[%s467 + $0x160] sm:$0xff] %v556
                  %v558 = vld [vmem:[%s466 + $0x268] sm:$0xff]
                  %559 = vst [vmem:[%s467 + $0x168] sm:$0xff] %v558
                  %v560 = vld [vmem:[%s466 + $0x270] sm:$0xff]
                  %561 = vst [vmem:[%s467 + $0x170] sm:$0xff] %v560
                  %v562 = vld [vmem:[%s466 + $0x278] sm:$0xff]
                  %563 = vst [vmem:[%s467 + $0x178] sm:$0xff] %v562
                  %v564 = vld [vmem:[%s466 + $0x300] sm:$0xff]
                  %565 = vst [vmem:[%s467 + $0x180] sm:$0xff] %v564
                  %v566 = vld [vmem:[%s466 + $0x308] sm:$0xff]
                  %567 = vst [vmem:[%s467 + $0x188] sm:$0xff] %v566
                  %v568 = vld [vmem:[%s466 + $0x310] sm:$0xff]
                  %569 = vst [vmem:[%s467 + $0x190] sm:$0xff] %v568
                  %v570 = vld [vmem:[%s466 + $0x318] sm:$0xff]
                  %571 = vst [vmem:[%s467 + $0x198] sm:$0xff] %v570
                  %v572 = vld [vmem:[%s466 + $0x320] sm:$0xff]
                  %573 = vst [vmem:[%s467 + $0x1a0] sm:$0xff] %v572
                  %v574 = vld [vmem:[%s466 + $0x328] sm:$0xff]
                  %575 = vst [vmem:[%s467 + $0x1a8] sm:$0xff] %v574
                  %v576 = vld [vmem:[%s466 + $0x330] sm:$0xff]
                  %577 = vst [vmem:[%s467 + $0x1b0] sm:$0xff] %v576
                  %v578 = vld [vmem:[%s466 + $0x338] sm:$0xff]
                  %579 = vst [vmem:[%s467 + $0x1b8] sm:$0xff] %v578
                  %v580 = vld [vmem:[%s466 + $0x340] sm:$0xff]
                  %581 = vst [vmem:[%s467 + $0x1c0] sm:$0xff] %v580
                  %v582 = vld [vmem:[%s466 + $0x348] sm:$0xff]
                  %583 = vst [vmem:[%s467 + $0x1c8] sm:$0xff] %v582
                  %v584 = vld [vmem:[%s466 + $0x350] sm:$0xff]
                  %585 = vst [vmem:[%s467 + $0x1d0] sm:$0xff] %v584
                  %v586 = vld [vmem:[%s466 + $0x358] sm:$0xff]
                  %587 = vst [vmem:[%s467 + $0x1d8] sm:$0xff] %v586
                  %v588 = vld [vmem:[%s466 + $0x360] sm:$0xff]
                  %589 = vst [vmem:[%s467 + $0x1e0] sm:$0xff] %v588
                  %v590 = vld [vmem:[%s466 + $0x368] sm:$0xff]
                  %591 = vst [vmem:[%s467 + $0x1e8] sm:$0xff] %v590
                  %v592 = vld [vmem:[%s466 + $0x370] sm:$0xff]
                  %593 = vst [vmem:[%s467 + $0x1f0] sm:$0xff] %v592
                  %v594 = vld [vmem:[%s466 + $0x378] sm:$0xff]
                  %595 = vst [vmem:[%s467 + $0x1f8] sm:$0xff] %v594
                  %v596 = vld [vmem:[%s466 + $0x400] sm:$0xff]
                  %597 = vst [vmem:[%s467 + $0x200] sm:$0xff] %v596
                  %v598 = vld [vmem:[%s466 + $0x408] sm:$0xff]
                  %599 = vst [vmem:[%s467 + $0x208] sm:$0xff] %v598
                  %v600 = vld [vmem:[%s466 + $0x410] sm:$0xff]
                  %601 = vst [vmem:[%s467 + $0x210] sm:$0xff] %v600
                  %v602 = vld [vmem:[%s466 + $0x418] sm:$0xff]
                  %603 = vst [vmem:[%s467 + $0x218] sm:$0xff] %v602
                  %v604 = vld [vmem:[%s466 + $0x420] sm:$0xff]
                  %605 = vst [vmem:[%s467 + $0x220] sm:$0xff] %v604
                  %v606 = vld [vmem:[%s466 + $0x428] sm:$0xff]
                  %607 = vst [vmem:[%s467 + $0x228] sm:$0xff] %v606
                  %v608 = vld [vmem:[%s466 + $0x430] sm:$0xff]
                  %609 = vst [vmem:[%s467 + $0x230] sm:$0xff] %v608
                  %v610 = vld [vmem:[%s466 + $0x438] sm:$0xff]
                  %611 = vst [vmem:[%s467 + $0x238] sm:$0xff] %v610
                  %v612 = vld [vmem:[%s466 + $0x440] sm:$0xff]
                  %613 = vst [vmem:[%s467 + $0x240] sm:$0xff] %v612
                  %v614 = vld [vmem:[%s466 + $0x448] sm:$0xff]
                  %615 = vst [vmem:[%s467 + $0x248] sm:$0xff] %v614
                  %v616 = vld [vmem:[%s466 + $0x450] sm:$0xff]
                  %617 = vst [vmem:[%s467 + $0x250] sm:$0xff] %v616
                  %v618 = vld [vmem:[%s466 + $0x458] sm:$0xff]
                  %619 = vst [vmem:[%s467 + $0x258] sm:$0xff] %v618
                  %v620 = vld [vmem:[%s466 + $0x460] sm:$0xff]
                  %621 = vst [vmem:[%s467 + $0x260] sm:$0xff] %v620
                  %v622 = vld [vmem:[%s466 + $0x468] sm:$0xff]
                  %623 = vst [vmem:[%s467 + $0x268] sm:$0xff] %v622
                  %v624 = vld [vmem:[%s466 + $0x470] sm:$0xff]
                  %625 = vst [vmem:[%s467 + $0x270] sm:$0xff] %v624
                  %v626 = vld [vmem:[%s466 + $0x478] sm:$0xff]
                  %627 = vst [vmem:[%s467 + $0x278] sm:$0xff] %v626
                  %v628 = vld [vmem:[%s466 + $0x500] sm:$0xff]
                  %629 = vst [vmem:[%s467 + $0x280] sm:$0xff] %v628
                  %v630 = vld [vmem:[%s466 + $0x508] sm:$0xff]
                  %631 = vst [vmem:[%s467 + $0x288] sm:$0xff] %v630
                  %v632 = vld [vmem:[%s466 + $0x510] sm:$0xff]
                  %633 = vst [vmem:[%s467 + $0x290] sm:$0xff] %v632
                  %v634 = vld [vmem:[%s466 + $0x518] sm:$0xff]
                  %635 = vst [vmem:[%s467 + $0x298] sm:$0xff] %v634
                  %v636 = vld [vmem:[%s466 + $0x520] sm:$0xff]
                  %637 = vst [vmem:[%s467 + $0x2a0] sm:$0xff] %v636
                  %v638 = vld [vmem:[%s466 + $0x528] sm:$0xff]
                  %639 = vst [vmem:[%s467 + $0x2a8] sm:$0xff] %v638
                  %v640 = vld [vmem:[%s466 + $0x530] sm:$0xff]
                  %641 = vst [vmem:[%s467 + $0x2b0] sm:$0xff] %v640
                  %v642 = vld [vmem:[%s466 + $0x538] sm:$0xff]
                  %643 = vst [vmem:[%s467 + $0x2b8] sm:$0xff] %v642
                  %v644 = vld [vmem:[%s466 + $0x540] sm:$0xff]
                  %645 = vst [vmem:[%s467 + $0x2c0] sm:$0xff] %v644
                  %v646 = vld [vmem:[%s466 + $0x548] sm:$0xff]
                  %647 = vst [vmem:[%s467 + $0x2c8] sm:$0xff] %v646
                  %v648 = vld [vmem:[%s466 + $0x550] sm:$0xff]
                  %649 = vst [vmem:[%s467 + $0x2d0] sm:$0xff] %v648
                  %v650 = vld [vmem:[%s466 + $0x558] sm:$0xff]
                  %651 = vst [vmem:[%s467 + $0x2d8] sm:$0xff] %v650
                  %v652 = vld [vmem:[%s466 + $0x560] sm:$0xff]
                  %653 = vst [vmem:[%s467 + $0x2e0] sm:$0xff] %v652
                  %v654 = vld [vmem:[%s466 + $0x568] sm:$0xff]
                  %655 = vst [vmem:[%s467 + $0x2e8] sm:$0xff] %v654
                  %v656 = vld [vmem:[%s466 + $0x570] sm:$0xff]
                  %657 = vst [vmem:[%s467 + $0x2f0] sm:$0xff] %v656
                  %v658 = vld [vmem:[%s466 + $0x578] sm:$0xff]
                  %659 = vst [vmem:[%s467 + $0x2f8] sm:$0xff] %v658
                  %v660 = vld [vmem:[%s466 + $0x600] sm:$0xff]
                  %661 = vst [vmem:[%s467 + $0x300] sm:$0xff] %v660
                  %v662 = vld [vmem:[%s466 + $0x608] sm:$0xff]
                  %663 = vst [vmem:[%s467 + $0x308] sm:$0xff] %v662
                  %v664 = vld [vmem:[%s466 + $0x610] sm:$0xff]
                  %665 = vst [vmem:[%s467 + $0x310] sm:$0xff] %v664
                  %v666 = vld [vmem:[%s466 + $0x618] sm:$0xff]
                  %667 = vst [vmem:[%s467 + $0x318] sm:$0xff] %v666
                  %v668 = vld [vmem:[%s466 + $0x620] sm:$0xff]
                  %669 = vst [vmem:[%s467 + $0x320] sm:$0xff] %v668
                  %v670 = vld [vmem:[%s466 + $0x628] sm:$0xff]
                  %671 = vst [vmem:[%s467 + $0x328] sm:$0xff] %v670
                  %v672 = vld [vmem:[%s466 + $0x630] sm:$0xff]
                  %673 = vst [vmem:[%s467 + $0x330] sm:$0xff] %v672
                  %v674 = vld [vmem:[%s466 + $0x638] sm:$0xff]
                  %675 = vst [vmem:[%s467 + $0x338] sm:$0xff] %v674
                  %v676 = vld [vmem:[%s466 + $0x640] sm:$0xff]
                  %677 = vst [vmem:[%s467 + $0x340] sm:$0xff] %v676
                  %v678 = vld [vmem:[%s466 + $0x648] sm:$0xff]
                  %679 = vst [vmem:[%s467 + $0x348] sm:$0xff] %v678
                  %v680 = vld [vmem:[%s466 + $0x650] sm:$0xff]
                  %681 = vst [vmem:[%s467 + $0x350] sm:$0xff] %v680
                  %v682 = vld [vmem:[%s466 + $0x658] sm:$0xff]
                  %683 = vst [vmem:[%s467 + $0x358] sm:$0xff] %v682
                  %v684 = vld [vmem:[%s466 + $0x660] sm:$0xff]
                  %685 = vst [vmem:[%s467 + $0x360] sm:$0xff] %v684
                  %v686 = vld [vmem:[%s466 + $0x668] sm:$0xff]
                  %687 = vst [vmem:[%s467 + $0x368] sm:$0xff] %v686
                  %v688 = vld [vmem:[%s466 + $0x670] sm:$0xff]
                  %689 = vst [vmem:[%s467 + $0x370] sm:$0xff] %v688
                  %v690 = vld [vmem:[%s466 + $0x678] sm:$0xff]
                  %691 = vst [vmem:[%s467 + $0x378] sm:$0xff] %v690
                  %v692 = vld [vmem:[%s466 + $0x700] sm:$0xff]
                  %693 = vst [vmem:[%s467 + $0x380] sm:$0xff] %v692
                  %v694 = vld [vmem:[%s466 + $0x708] sm:$0xff]
                  %695 = vst [vmem:[%s467 + $0x388] sm:$0xff] %v694
                  %v696 = vld [vmem:[%s466 + $0x710] sm:$0xff]
                  %697 = vst [vmem:[%s467 + $0x390] sm:$0xff] %v696
                  %v698 = vld [vmem:[%s466 + $0x718] sm:$0xff]
                  %699 = vst [vmem:[%s467 + $0x398] sm:$0xff] %v698
                  %v700 = vld [vmem:[%s466 + $0x720] sm:$0xff]
                  %701 = vst [vmem:[%s467 + $0x3a0] sm:$0xff] %v700
                  %v702 = vld [vmem:[%s466 + $0x728] sm:$0xff]
                  %703 = vst [vmem:[%s467 + $0x3a8] sm:$0xff] %v702
                  %v704 = vld [vmem:[%s466 + $0x730] sm:$0xff]
                  %705 = vst [vmem:[%s467 + $0x3b0] sm:$0xff] %v704
                  %v706 = vld [vmem:[%s466 + $0x738] sm:$0xff]
                  %707 = vst [vmem:[%s467 + $0x3b8] sm:$0xff] %v706
                  %v708 = vld [vmem:[%s466 + $0x740] sm:$0xff]
                  %709 = vst [vmem:[%s467 + $0x3c0] sm:$0xff] %v708
                  %v710 = vld [vmem:[%s466 + $0x748] sm:$0xff]
                  %711 = vst [vmem:[%s467 + $0x3c8] sm:$0xff] %v710
                  %v712 = vld [vmem:[%s466 + $0x750] sm:$0xff]
                  %713 = vst [vmem:[%s467 + $0x3d0] sm:$0xff] %v712
                  %v714 = vld [vmem:[%s466 + $0x758] sm:$0xff]
                  %715 = vst [vmem:[%s467 + $0x3d8] sm:$0xff] %v714
                  %v716 = vld [vmem:[%s466 + $0x760] sm:$0xff]
                  %717 = vst [vmem:[%s467 + $0x3e0] sm:$0xff] %v716
                  %v718 = vld [vmem:[%s466 + $0x768] sm:$0xff]
                  %719 = vst [vmem:[%s467 + $0x3e8] sm:$0xff] %v718
                  %v720 = vld [vmem:[%s466 + $0x770] sm:$0xff]
                  %721 = vst [vmem:[%s467 + $0x3f0] sm:$0xff] %v720
                  %v722 = vld [vmem:[%s466 + $0x778] sm:$0xff]
                  %723 = vst [vmem:[%s467 + $0x3f8] sm:$0xff] %v722
                $region56: #{tpu_custom_call.1} parent=50 // loop_footer
                  %s465 = sadd.s32 1, %s461
                $region57: #{tpu_custom_call.1} parent=50 // loop_footer_branch
                  %460 = sbr.rel target = $region53
                $region58: #{tpu_custom_call.1} parent=50 // loop_exit
                  _
              $region51: #{tpu_custom_call.1} parent=35 // pred_fallthru
                _
              // Predicated region
              $region59: #{tpu_custom_call.1} parent=35 // pred_check
                _
              $region60: #{tpu_custom_call.1} parent=35 // pred_check_branch
                %725 = sbr.rel target = $region62
              $region61: #{tpu_custom_call.1} parent=35 // pred_region
                _
              $region62: #{tpu_custom_call.1} parent=35 // pred_fallthru
                _
            $region36: #{tpu_custom_call.1} parent=31 // pred_fallthru
              _
            // Predicated region
            $region37: #{tpu_custom_call.1} parent=31 // pred_check
              _
            $region38: #{tpu_custom_call.1} parent=31 // pred_check_branch
              %191 = sbr.rel target = $region40
            $region39: #{tpu_custom_call.1} parent=31 // pred_region
              %s193 = ssub.s32 256, 1
              loop: start=0, step=1, limit=1
              $region41: #{tpu_custom_call.1} parent=39 // loop_pre_header
                _
              $region42: #{tpu_custom_call.1} parent=39 // loop_header
                %s195 = sphi 0, %s199
                %p196 = scmp.ge.s32.totalorder %s195, 1
                %s200 = sphi %s185, %s185
                %s201 = sphi %s179, %s179
              $region43: #{tpu_custom_call.1} parent=39 // loop_header_branch
                %198 = sbr.rel (%p196) target = $region47
              $region44: #{tpu_custom_call.1} parent=39 // loop_body
                %v202 = vld [vmem:[%s200] sm:%s193]
                %203 = vst [vmem:[%s201] sm:%s193] %v202
                %v204 = vld [vmem:[%s200 + $0x8] sm:%s193]
                %205 = vst [vmem:[%s201 + $0x8] sm:%s193] %v204
                %v206 = vld [vmem:[%s200 + $0x10] sm:%s193]
                %207 = vst [vmem:[%s201 + $0x10] sm:%s193] %v206
                %v208 = vld [vmem:[%s200 + $0x18] sm:%s193]
                %209 = vst [vmem:[%s201 + $0x18] sm:%s193] %v208
                %v210 = vld [vmem:[%s200 + $0x20] sm:%s193]
                %211 = vst [vmem:[%s201 + $0x20] sm:%s193] %v210
                %v212 = vld [vmem:[%s200 + $0x28] sm:%s193]
                %213 = vst [vmem:[%s201 + $0x28] sm:%s193] %v212
                %v214 = vld [vmem:[%s200 + $0x30] sm:%s193]
                %215 = vst [vmem:[%s201 + $0x30] sm:%s193] %v214
                %v216 = vld [vmem:[%s200 + $0x38] sm:%s193]
                %217 = vst [vmem:[%s201 + $0x38] sm:%s193] %v216
                %v218 = vld [vmem:[%s200 + $0x40] sm:%s193]
                %219 = vst [vmem:[%s201 + $0x40] sm:%s193] %v218
                %v220 = vld [vmem:[%s200 + $0x48] sm:%s193]
                %221 = vst [vmem:[%s201 + $0x48] sm:%s193] %v220
                %v222 = vld [vmem:[%s200 + $0x50] sm:%s193]
                %223 = vst [vmem:[%s201 + $0x50] sm:%s193] %v222
                %v224 = vld [vmem:[%s200 + $0x58] sm:%s193]
                %225 = vst [vmem:[%s201 + $0x58] sm:%s193] %v224
                %v226 = vld [vmem:[%s200 + $0x60] sm:%s193]
                %227 = vst [vmem:[%s201 + $0x60] sm:%s193] %v226
                %v228 = vld [vmem:[%s200 + $0x68] sm:%s193]
                %229 = vst [vmem:[%s201 + $0x68] sm:%s193] %v228
                %v230 = vld [vmem:[%s200 + $0x70] sm:%s193]
                %231 = vst [vmem:[%s201 + $0x70] sm:%s193] %v230
                %v232 = vld [vmem:[%s200 + $0x78] sm:%s193]
                %233 = vst [vmem:[%s201 + $0x78] sm:%s193] %v232
                %v234 = vld [vmem:[%s200 + $0x100] sm:%s193]
                %235 = vst [vmem:[%s201 + $0x80] sm:%s193] %v234
                %v236 = vld [vmem:[%s200 + $0x108] sm:%s193]
                %237 = vst [vmem:[%s201 + $0x88] sm:%s193] %v236
                %v238 = vld [vmem:[%s200 + $0x110] sm:%s193]
                %239 = vst [vmem:[%s201 + $0x90] sm:%s193] %v238
                %v240 = vld [vmem:[%s200 + $0x118] sm:%s193]
                %241 = vst [vmem:[%s201 + $0x98] sm:%s193] %v240
                %v242 = vld [vmem:[%s200 + $0x120] sm:%s193]
                %243 = vst [vmem:[%s201 + $0xa0] sm:%s193] %v242
                %v244 = vld [vmem:[%s200 + $0x128] sm:%s193]
                %245 = vst [vmem:[%s201 + $0xa8] sm:%s193] %v244
                %v246 = vld [vmem:[%s200 + $0x130] sm:%s193]
                %247 = vst [vmem:[%s201 + $0xb0] sm:%s193] %v246
                %v248 = vld [vmem:[%s200 + $0x138] sm:%s193]
                %249 = vst [vmem:[%s201 + $0xb8] sm:%s193] %v248
                %v250 = vld [vmem:[%s200 + $0x140] sm:%s193]
                %251 = vst [vmem:[%s201 + $0xc0] sm:%s193] %v250
                %v252 = vld [vmem:[%s200 + $0x148] sm:%s193]
                %253 = vst [vmem:[%s201 + $0xc8] sm:%s193] %v252
                %v254 = vld [vmem:[%s200 + $0x150] sm:%s193]
                %255 = vst [vmem:[%s201 + $0xd0] sm:%s193] %v254
                %v256 = vld [vmem:[%s200 + $0x158] sm:%s193]
                %257 = vst [vmem:[%s201 + $0xd8] sm:%s193] %v256
                %v258 = vld [vmem:[%s200 + $0x160] sm:%s193]
                %259 = vst [vmem:[%s201 + $0xe0] sm:%s193] %v258
                %v260 = vld [vmem:[%s200 + $0x168] sm:%s193]
                %261 = vst [vmem:[%s201 + $0xe8] sm:%s193] %v260
                %v262 = vld [vmem:[%s200 + $0x170] sm:%s193]
                %263 = vst [vmem:[%s201 + $0xf0] sm:%s193] %v262
                %v264 = vld [vmem:[%s200 + $0x178] sm:%s193]
                %265 = vst [vmem:[%s201 + $0xf8] sm:%s193] %v264
                %v266 = vld [vmem:[%s200 + $0x200] sm:%s193]
                %267 = vst [vmem:[%s201 + $0x100] sm:%s193] %v266
                %v268 = vld [vmem:[%s200 + $0x208] sm:%s193]
                %269 = vst [vmem:[%s201 + $0x108] sm:%s193] %v268
                %v270 = vld [vmem:[%s200 + $0x210] sm:%s193]
                %271 = vst [vmem:[%s201 + $0x110] sm:%s193] %v270
                %v272 = vld [vmem:[%s200 + $0x218] sm:%s193]
                %273 = vst [vmem:[%s201 + $0x118] sm:%s193] %v272
                %v274 = vld [vmem:[%s200 + $0x220] sm:%s193]
                %275 = vst [vmem:[%s201 + $0x120] sm:%s193] %v274
                %v276 = vld [vmem:[%s200 + $0x228] sm:%s193]
                %277 = vst [vmem:[%s201 + $0x128] sm:%s193] %v276
                %v278 = vld [vmem:[%s200 + $0x230] sm:%s193]
                %279 = vst [vmem:[%s201 + $0x130] sm:%s193] %v278
                %v280 = vld [vmem:[%s200 + $0x238] sm:%s193]
                %281 = vst [vmem:[%s201 + $0x138] sm:%s193] %v280
                %v282 = vld [vmem:[%s200 + $0x240] sm:%s193]
                %283 = vst [vmem:[%s201 + $0x140] sm:%s193] %v282
                %v284 = vld [vmem:[%s200 + $0x248] sm:%s193]
                %285 = vst [vmem:[%s201 + $0x148] sm:%s193] %v284
                %v286 = vld [vmem:[%s200 + $0x250] sm:%s193]
                %287 = vst [vmem:[%s201 + $0x150] sm:%s193] %v286
                %v288 = vld [vmem:[%s200 + $0x258] sm:%s193]
                %289 = vst [vmem:[%s201 + $0x158] sm:%s193] %v288
                %v290 = vld [vmem:[%s200 + $0x260] sm:%s193]
                %291 = vst [vmem:[%s201 + $0x160] sm:%s193] %v290
                %v292 = vld [vmem:[%s200 + $0x268] sm:%s193]
                %293 = vst [vmem:[%s201 + $0x168] sm:%s193] %v292
                %v294 = vld [vmem:[%s200 + $0x270] sm:%s193]
                %295 = vst [vmem:[%s201 + $0x170] sm:%s193] %v294
                %v296 = vld [vmem:[%s200 + $0x278] sm:%s193]
                %297 = vst [vmem:[%s201 + $0x178] sm:%s193] %v296
                %v298 = vld [vmem:[%s200 + $0x300] sm:%s193]
                %299 = vst [vmem:[%s201 + $0x180] sm:%s193] %v298
                %v300 = vld [vmem:[%s200 + $0x308] sm:%s193]
                %301 = vst [vmem:[%s201 + $0x188] sm:%s193] %v300
                %v302 = vld [vmem:[%s200 + $0x310] sm:%s193]
                %303 = vst [vmem:[%s201 + $0x190] sm:%s193] %v302
                %v304 = vld [vmem:[%s200 + $0x318] sm:%s193]
                %305 = vst [vmem:[%s201 + $0x198] sm:%s193] %v304
                %v306 = vld [vmem:[%s200 + $0x320] sm:%s193]
                %307 = vst [vmem:[%s201 + $0x1a0] sm:%s193] %v306
                %v308 = vld [vmem:[%s200 + $0x328] sm:%s193]
                %309 = vst [vmem:[%s201 + $0x1a8] sm:%s193] %v308
                %v310 = vld [vmem:[%s200 + $0x330] sm:%s193]
                %311 = vst [vmem:[%s201 + $0x1b0] sm:%s193] %v310
                %v312 = vld [vmem:[%s200 + $0x338] sm:%s193]
                %313 = vst [vmem:[%s201 + $0x1b8] sm:%s193] %v312
                %v314 = vld [vmem:[%s200 + $0x340] sm:%s193]
                %315 = vst [vmem:[%s201 + $0x1c0] sm:%s193] %v314
                %v316 = vld [vmem:[%s200 + $0x348] sm:%s193]
                %317 = vst [vmem:[%s201 + $0x1c8] sm:%s193] %v316
                %v318 = vld [vmem:[%s200 + $0x350] sm:%s193]
                %319 = vst [vmem:[%s201 + $0x1d0] sm:%s193] %v318
                %v320 = vld [vmem:[%s200 + $0x358] sm:%s193]
                %321 = vst [vmem:[%s201 + $0x1d8] sm:%s193] %v320
                %v322 = vld [vmem:[%s200 + $0x360] sm:%s193]
                %323 = vst [vmem:[%s201 + $0x1e0] sm:%s193] %v322
                %v324 = vld [vmem:[%s200 + $0x368] sm:%s193]
                %325 = vst [vmem:[%s201 + $0x1e8] sm:%s193] %v324
                %v326 = vld [vmem:[%s200 + $0x370] sm:%s193]
                %327 = vst [vmem:[%s201 + $0x1f0] sm:%s193] %v326
                %v328 = vld [vmem:[%s200 + $0x378] sm:%s193]
                %329 = vst [vmem:[%s201 + $0x1f8] sm:%s193] %v328
                %v330 = vld [vmem:[%s200 + $0x400] sm:%s193]
                %331 = vst [vmem:[%s201 + $0x200] sm:%s193] %v330
                %v332 = vld [vmem:[%s200 + $0x408] sm:%s193]
                %333 = vst [vmem:[%s201 + $0x208] sm:%s193] %v332
                %v334 = vld [vmem:[%s200 + $0x410] sm:%s193]
                %335 = vst [vmem:[%s201 + $0x210] sm:%s193] %v334
                %v336 = vld [vmem:[%s200 + $0x418] sm:%s193]
                %337 = vst [vmem:[%s201 + $0x218] sm:%s193] %v336
                %v338 = vld [vmem:[%s200 + $0x420] sm:%s193]
                %339 = vst [vmem:[%s201 + $0x220] sm:%s193] %v338
                %v340 = vld [vmem:[%s200 + $0x428] sm:%s193]
                %341 = vst [vmem:[%s201 + $0x228] sm:%s193] %v340
                %v342 = vld [vmem:[%s200 + $0x430] sm:%s193]
                %343 = vst [vmem:[%s201 + $0x230] sm:%s193] %v342
                %v344 = vld [vmem:[%s200 + $0x438] sm:%s193]
                %345 = vst [vmem:[%s201 + $0x238] sm:%s193] %v344
                %v346 = vld [vmem:[%s200 + $0x440] sm:%s193]
                %347 = vst [vmem:[%s201 + $0x240] sm:%s193] %v346
                %v348 = vld [vmem:[%s200 + $0x448] sm:%s193]
                %349 = vst [vmem:[%s201 + $0x248] sm:%s193] %v348
                %v350 = vld [vmem:[%s200 + $0x450] sm:%s193]
                %351 = vst [vmem:[%s201 + $0x250] sm:%s193] %v350
                %v352 = vld [vmem:[%s200 + $0x458] sm:%s193]
                %353 = vst [vmem:[%s201 + $0x258] sm:%s193] %v352
                %v354 = vld [vmem:[%s200 + $0x460] sm:%s193]
                %355 = vst [vmem:[%s201 + $0x260] sm:%s193] %v354
                %v356 = vld [vmem:[%s200 + $0x468] sm:%s193]
                %357 = vst [vmem:[%s201 + $0x268] sm:%s193] %v356
                %v358 = vld [vmem:[%s200 + $0x470] sm:%s193]
                %359 = vst [vmem:[%s201 + $0x270] sm:%s193] %v358
                %v360 = vld [vmem:[%s200 + $0x478] sm:%s193]
                %361 = vst [vmem:[%s201 + $0x278] sm:%s193] %v360
                %v362 = vld [vmem:[%s200 + $0x500] sm:%s193]
                %363 = vst [vmem:[%s201 + $0x280] sm:%s193] %v362
                %v364 = vld [vmem:[%s200 + $0x508] sm:%s193]
                %365 = vst [vmem:[%s201 + $0x288] sm:%s193] %v364
                %v366 = vld [vmem:[%s200 + $0x510] sm:%s193]
                %367 = vst [vmem:[%s201 + $0x290] sm:%s193] %v366
                %v368 = vld [vmem:[%s200 + $0x518] sm:%s193]
                %369 = vst [vmem:[%s201 + $0x298] sm:%s193] %v368
                %v370 = vld [vmem:[%s200 + $0x520] sm:%s193]
                %371 = vst [vmem:[%s201 + $0x2a0] sm:%s193] %v370
                %v372 = vld [vmem:[%s200 + $0x528] sm:%s193]
                %373 = vst [vmem:[%s201 + $0x2a8] sm:%s193] %v372
                %v374 = vld [vmem:[%s200 + $0x530] sm:%s193]
                %375 = vst [vmem:[%s201 + $0x2b0] sm:%s193] %v374
                %v376 = vld [vmem:[%s200 + $0x538] sm:%s193]
                %377 = vst [vmem:[%s201 + $0x2b8] sm:%s193] %v376
                %v378 = vld [vmem:[%s200 + $0x540] sm:%s193]
                %379 = vst [vmem:[%s201 + $0x2c0] sm:%s193] %v378
                %v380 = vld [vmem:[%s200 + $0x548] sm:%s193]
                %381 = vst [vmem:[%s201 + $0x2c8] sm:%s193] %v380
                %v382 = vld [vmem:[%s200 + $0x550] sm:%s193]
                %383 = vst [vmem:[%s201 + $0x2d0] sm:%s193] %v382
                %v384 = vld [vmem:[%s200 + $0x558] sm:%s193]
                %385 = vst [vmem:[%s201 + $0x2d8] sm:%s193] %v384
                %v386 = vld [vmem:[%s200 + $0x560] sm:%s193]
                %387 = vst [vmem:[%s201 + $0x2e0] sm:%s193] %v386
                %v388 = vld [vmem:[%s200 + $0x568] sm:%s193]
                %389 = vst [vmem:[%s201 + $0x2e8] sm:%s193] %v388
                %v390 = vld [vmem:[%s200 + $0x570] sm:%s193]
                %391 = vst [vmem:[%s201 + $0x2f0] sm:%s193] %v390
                %v392 = vld [vmem:[%s200 + $0x578] sm:%s193]
                %393 = vst [vmem:[%s201 + $0x2f8] sm:%s193] %v392
                %v394 = vld [vmem:[%s200 + $0x600] sm:%s193]
                %395 = vst [vmem:[%s201 + $0x300] sm:%s193] %v394
                %v396 = vld [vmem:[%s200 + $0x608] sm:%s193]
                %397 = vst [vmem:[%s201 + $0x308] sm:%s193] %v396
                %v398 = vld [vmem:[%s200 + $0x610] sm:%s193]
                %399 = vst [vmem:[%s201 + $0x310] sm:%s193] %v398
                %v400 = vld [vmem:[%s200 + $0x618] sm:%s193]
                %401 = vst [vmem:[%s201 + $0x318] sm:%s193] %v400
                %v402 = vld [vmem:[%s200 + $0x620] sm:%s193]
                %403 = vst [vmem:[%s201 + $0x320] sm:%s193] %v402
                %v404 = vld [vmem:[%s200 + $0x628] sm:%s193]
                %405 = vst [vmem:[%s201 + $0x328] sm:%s193] %v404
                %v406 = vld [vmem:[%s200 + $0x630] sm:%s193]
                %407 = vst [vmem:[%s201 + $0x330] sm:%s193] %v406
                %v408 = vld [vmem:[%s200 + $0x638] sm:%s193]
                %409 = vst [vmem:[%s201 + $0x338] sm:%s193] %v408
                %v410 = vld [vmem:[%s200 + $0x640] sm:%s193]
                %411 = vst [vmem:[%s201 + $0x340] sm:%s193] %v410
                %v412 = vld [vmem:[%s200 + $0x648] sm:%s193]
                %413 = vst [vmem:[%s201 + $0x348] sm:%s193] %v412
                %v414 = vld [vmem:[%s200 + $0x650] sm:%s193]
                %415 = vst [vmem:[%s201 + $0x350] sm:%s193] %v414
                %v416 = vld [vmem:[%s200 + $0x658] sm:%s193]
                %417 = vst [vmem:[%s201 + $0x358] sm:%s193] %v416
                %v418 = vld [vmem:[%s200 + $0x660] sm:%s193]
                %419 = vst [vmem:[%s201 + $0x360] sm:%s193] %v418
                %v420 = vld [vmem:[%s200 + $0x668] sm:%s193]
                %421 = vst [vmem:[%s201 + $0x368] sm:%s193] %v420
                %v422 = vld [vmem:[%s200 + $0x670] sm:%s193]
                %423 = vst [vmem:[%s201 + $0x370] sm:%s193] %v422
                %v424 = vld [vmem:[%s200 + $0x678] sm:%s193]
                %425 = vst [vmem:[%s201 + $0x378] sm:%s193] %v424
                %v426 = vld [vmem:[%s200 + $0x700] sm:%s193]
                %427 = vst [vmem:[%s201 + $0x380] sm:%s193] %v426
                %v428 = vld [vmem:[%s200 + $0x708] sm:%s193]
                %429 = vst [vmem:[%s201 + $0x388] sm:%s193] %v428
                %v430 = vld [vmem:[%s200 + $0x710] sm:%s193]
                %431 = vst [vmem:[%s201 + $0x390] sm:%s193] %v430
                %v432 = vld [vmem:[%s200 + $0x718] sm:%s193]
                %433 = vst [vmem:[%s201 + $0x398] sm:%s193] %v432
                %v434 = vld [vmem:[%s200 + $0x720] sm:%s193]
                %435 = vst [vmem:[%s201 + $0x3a0] sm:%s193] %v434
                %v436 = vld [vmem:[%s200 + $0x728] sm:%s193]
                %437 = vst [vmem:[%s201 + $0x3a8] sm:%s193] %v436
                %v438 = vld [vmem:[%s200 + $0x730] sm:%s193]
                %439 = vst [vmem:[%s201 + $0x3b0] sm:%s193] %v438
                %v440 = vld [vmem:[%s200 + $0x738] sm:%s193]
                %441 = vst [vmem:[%s201 + $0x3b8] sm:%s193] %v440
                %v442 = vld [vmem:[%s200 + $0x740] sm:%s193]
                %443 = vst [vmem:[%s201 + $0x3c0] sm:%s193] %v442
                %v444 = vld [vmem:[%s200 + $0x748] sm:%s193]
                %445 = vst [vmem:[%s201 + $0x3c8] sm:%s193] %v444
                %v446 = vld [vmem:[%s200 + $0x750] sm:%s193]
                %447 = vst [vmem:[%s201 + $0x3d0] sm:%s193] %v446
                %v448 = vld [vmem:[%s200 + $0x758] sm:%s193]
                %449 = vst [vmem:[%s201 + $0x3d8] sm:%s193] %v448
                %v450 = vld [vmem:[%s200 + $0x760] sm:%s193]
                %451 = vst [vmem:[%s201 + $0x3e0] sm:%s193] %v450
                %v452 = vld [vmem:[%s200 + $0x768] sm:%s193]
                %453 = vst [vmem:[%s201 + $0x3e8] sm:%s193] %v452
                %v454 = vld [vmem:[%s200 + $0x770] sm:%s193]
                %455 = vst [vmem:[%s201 + $0x3f0] sm:%s193] %v454
                %v456 = vld [vmem:[%s200 + $0x778] sm:%s193]
                %457 = vst [vmem:[%s201 + $0x3f8] sm:%s193] %v456
              $region45: #{tpu_custom_call.1} parent=39 // loop_footer
                %s199 = sadd.s32 1, %s195
              $region46: #{tpu_custom_call.1} parent=39 // loop_footer_branch
                %194 = sbr.rel target = $region42
              $region47: #{tpu_custom_call.1} parent=39 // loop_exit
                _
            $region40: #{tpu_custom_call.1} parent=31 // pred_fallthru
              _
          $region32: #{tpu_custom_call.1} parent=27 // pred_fallthru
            _
          %726 = vnop
        $region28: #{tpu_custom_call.1} parent=23 // pred_fallthru
          _
        // Predicated region
        $region63: #{tpu_custom_call.1} parent=23 // pred_check
          %p727 = pneg %p74
        $region64: #{tpu_custom_call.1} parent=23 // pred_check_branch
          %729 = sbr.rel (%p727) target = $region66
        $region65: #{tpu_custom_call.1} parent=23 // pred_region
          %p730 = scmp.lt.s32.totalorder %s19, 1
          %s731 = scalar_select %p730, %s19, 1
          %p732 = scmp.lt.s32.totalorder %s20, 1
          %s733 = scalar_select %p732, %s20, 1
          %s734 = smul.addr %s731, 2
          %s735 = sadd.s32 %s733, %s734
          %s736 = smul.addr %s735, 8
          %s737 = scalar_lea.vmem %s1, %s736
        $region66: #{tpu_custom_call.1} parent=23 // pred_fallthru
          _
      $region24: #{tpu_custom_call.1} parent=5 // pred_fallthru
        _
      %p738 = scmp.le.s32.totalorder 1, %s12
      %p739 = scmp.lt.s32.totalorder %s12, 5
      %p740 = pnand %p738, %p739
      %p741 = pneg %p740
      // Predicated region
      $region67: #{tpu_custom_call.1} parent=5 // pred_check
        _
      $region68: #{tpu_custom_call.1} parent=5 // pred_check_branch
        %743 = sbr.rel (%p740) target = $region70
      $region69: #{tpu_custom_call.1} parent=5 // pred_region
        %s744 = ssub.s32 %s12, 1
        %s745 = sand.u32 %s39, 1
        %s746 = sand.u32 %s39, 1
        %s747 = smul.addr %s746, 1024
        %s748 = scalar_lea.vmem [#allocation5], %s747
        // Predicated region
        $region71: #{tpu_custom_call.1} parent=69 // pred_check
          %p749 = pneg %p52
        $region72: #{tpu_custom_call.1} parent=69 // pred_check_branch
          %751 = sbr.rel (%p749) target = $region74
        $region73: #{tpu_custom_call.1} parent=69 // pred_region
          _
        $region74: #{tpu_custom_call.1} parent=69 // pred_fallthru
          _
        %s752 = sand.u32 %s39, 1
        %s753 = sand.u32 %s39, 1
        %s754 = smul.addr %s753, 1024
        %s755 = scalar_lea.vmem [#allocation5], %s754
        %p756 = pneg %p52
        %p757 = pneg %p49
        %p758 = scmp.lt.s32.totalorder %s21, 1
        %s759 = scalar_select %p758, %s21, 1
        %p760 = scmp.lt.s32.totalorder %s22, 1
        %s761 = scalar_select %p760, %s22, 1
        %s762 = smul.addr %s759, 2
        %s763 = sadd.s32 %s761, %s762
        %s764 = smul.addr %s763, 8
        %s765 = scalar_lea.vmem %s1, %s764
        %p766 = pneg %p80
        %p767 = pneg %p77
        %p768 = pneg %p101
        %p769 = pneg %p98
        %p770 = pneg %p122
        %p771 = pneg %p119
        %p772 = pneg %p148
        %p773 = pneg %p145
        %p774 = scmp.lt.s32.totalorder %s21, 1
        %s775 = scalar_select %p774, %s21, 1
        %s776 = smul.addr %s775, 8
        %s777 = scalar_lea.vmem %s4, %s776
        %s778 = smul.u32 8, %s21
        %s779 = smul.u32 16, %s22
        %p780 = scmp.lt.s32.totalorder %s21, 1
        %s781 = scalar_select %p780, %s21, 1
        %p782 = scmp.lt.s32.totalorder %s22, 1
        %s783 = scalar_select %p782, %s22, 1
        %s784 = smul.addr %s781, 2
        %s785 = sadd.s32 %s783, %s784
        %s786 = smul.addr %s785, 8
        %s787 = scalar_lea.vmem %s1, %s786
        %p788 = scmp.lt.s32.totalorder %s21, 1
        %s789 = scalar_select %p788, %s21, 1
        %s790 = smul.addr %s789, 8
        %s791 = scalar_lea.vmem %s4, %s790
        %p792 = scmp.eq.s32.totalorder %s22, 0
        // Predicated region
        $region75: #{tpu_custom_call.1} parent=69 // pred_check
          %p793 = pneg %p792
        $region76: #{tpu_custom_call.1} parent=69 // pred_check_branch
          %795 = sbr.rel (%p793) target = $region78
        $region77: #{tpu_custom_call.1} parent=69 // pred_region
          %vm796 = vcmask 261120
          %797 = vst.msk [vmem:[#allocation2] sm:$0xff] %vm796, 0.0
          %vm798 = vcmask 7168
          %799 = vst.msk [vmem:[#allocation3] sm:$0xff] %vm798, 0.0
        $region78: #{tpu_custom_call.1} parent=69 // pred_fallthru
          _
        %v800 = vld [vmem:[%s748] sm:$0xff]
        %v801 = vld [vmem:[%s748 + $0x8] sm:$0xff]
        %v802 = vld [vmem:[%s748 + $0x10] sm:$0xff]
        %v803 = vld [vmem:[%s748 + $0x18] sm:$0xff]
        %v804 = vld [vmem:[%s748 + $0x20] sm:$0xff]
        %v805 = vld [vmem:[%s748 + $0x28] sm:$0xff]
        %v806 = vld [vmem:[%s748 + $0x30] sm:$0xff]
        %v807 = vld [vmem:[%s748 + $0x38] sm:$0xff]
        %v808 = vld [vmem:[%s748 + $0x40] sm:$0xff]
        %v809 = vld [vmem:[%s748 + $0x48] sm:$0xff]
        %v810 = vld [vmem:[%s748 + $0x50] sm:$0xff]
        %v811 = vld [vmem:[%s748 + $0x58] sm:$0xff]
        %v812 = vld [vmem:[%s748 + $0x60] sm:$0xff]
        %v813 = vld [vmem:[%s748 + $0x68] sm:$0xff]
        %v814 = vld [vmem:[%s748 + $0x70] sm:$0xff]
        %v815 = vld [vmem:[%s748 + $0x78] sm:$0xff]
        %v816 = vld [vmem:[%s748 + $0x80] sm:$0xff]
        %v817 = vld [vmem:[%s748 + $0x88] sm:$0xff]
        %v818 = vld [vmem:[%s748 + $0x90] sm:$0xff]
        %v819 = vld [vmem:[%s748 + $0x98] sm:$0xff]
        %v820 = vld [vmem:[%s748 + $0xa0] sm:$0xff]
        %v821 = vld [vmem:[%s748 + $0xa8] sm:$0xff]
        %v822 = vld [vmem:[%s748 + $0xb0] sm:$0xff]
        %v823 = vld [vmem:[%s748 + $0xb8] sm:$0xff]
        %v824 = vld [vmem:[%s748 + $0xc0] sm:$0xff]
        %v825 = vld [vmem:[%s748 + $0xc8] sm:$0xff]
        %v826 = vld [vmem:[%s748 + $0xd0] sm:$0xff]
        %v827 = vld [vmem:[%s748 + $0xd8] sm:$0xff]
        %v828 = vld [vmem:[%s748 + $0xe0] sm:$0xff]
        %v829 = vld [vmem:[%s748 + $0xe8] sm:$0xff]
        %v830 = vld [vmem:[%s748 + $0xf0] sm:$0xff]
        %v831 = vld [vmem:[%s748 + $0xf8] sm:$0xff]
        %v832 = vld [vmem:[%s748 + $0x100] sm:$0xff]
        %v833 = vld [vmem:[%s748 + $0x108] sm:$0xff]
        %v834 = vld [vmem:[%s748 + $0x110] sm:$0xff]
        %v835 = vld [vmem:[%s748 + $0x118] sm:$0xff]
        %v836 = vld [vmem:[%s748 + $0x120] sm:$0xff]
        %v837 = vld [vmem:[%s748 + $0x128] sm:$0xff]
        %v838 = vld [vmem:[%s748 + $0x130] sm:$0xff]
        %v839 = vld [vmem:[%s748 + $0x138] sm:$0xff]
        %v840 = vld [vmem:[%s748 + $0x140] sm:$0xff]
        %v841 = vld [vmem:[%s748 + $0x148] sm:$0xff]
        %v842 = vld [vmem:[%s748 + $0x150] sm:$0xff]
        %v843 = vld [vmem:[%s748 + $0x158] sm:$0xff]
        %v844 = vld [vmem:[%s748 + $0x160] sm:$0xff]
        %v845 = vld [vmem:[%s748 + $0x168] sm:$0xff]
        %v846 = vld [vmem:[%s748 + $0x170] sm:$0xff]
        %v847 = vld [vmem:[%s748 + $0x178] sm:$0xff]
        %v848 = vld [vmem:[%s748 + $0x180] sm:$0xff]
        %v849 = vld [vmem:[%s748 + $0x188] sm:$0xff]
        %v850 = vld [vmem:[%s748 + $0x190] sm:$0xff]
        %v851 = vld [vmem:[%s748 + $0x198] sm:$0xff]
        %v852 = vld [vmem:[%s748 + $0x1a0] sm:$0xff]
        %v853 = vld [vmem:[%s748 + $0x1a8] sm:$0xff]
        %v854 = vld [vmem:[%s748 + $0x1b0] sm:$0xff]
        %v855 = vld [vmem:[%s748 + $0x1b8] sm:$0xff]
        %v856 = vld [vmem:[%s748 + $0x1c0] sm:$0xff]
        %v857 = vld [vmem:[%s748 + $0x1c8] sm:$0xff]
        %v858 = vld [vmem:[%s748 + $0x1d0] sm:$0xff]
        %v859 = vld [vmem:[%s748 + $0x1d8] sm:$0xff]
        %v860 = vld [vmem:[%s748 + $0x1e0] sm:$0xff]
        %v861 = vld [vmem:[%s748 + $0x1e8] sm:$0xff]
        %v862 = vld [vmem:[%s748 + $0x1f0] sm:$0xff]
        %v863 = vld [vmem:[%s748 + $0x1f8] sm:$0xff]
        %v864 = vld [vmem:[%s748 + $0x200] sm:$0xff]
        %v865 = vld [vmem:[%s748 + $0x208] sm:$0xff]
        %v866 = vld [vmem:[%s748 + $0x210] sm:$0xff]
        %v867 = vld [vmem:[%s748 + $0x218] sm:$0xff]
        %v868 = vld [vmem:[%s748 + $0x220] sm:$0xff]
        %v869 = vld [vmem:[%s748 + $0x228] sm:$0xff]
        %v870 = vld [vmem:[%s748 + $0x230] sm:$0xff]
        %v871 = vld [vmem:[%s748 + $0x238] sm:$0xff]
        %v872 = vld [vmem:[%s748 + $0x240] sm:$0xff]
        %v873 = vld [vmem:[%s748 + $0x248] sm:$0xff]
        %v874 = vld [vmem:[%s748 + $0x250] sm:$0xff]
        %v875 = vld [vmem:[%s748 + $0x258] sm:$0xff]
        %v876 = vld [vmem:[%s748 + $0x260] sm:$0xff]
        %v877 = vld [vmem:[%s748 + $0x268] sm:$0xff]
        %v878 = vld [vmem:[%s748 + $0x270] sm:$0xff]
        %v879 = vld [vmem:[%s748 + $0x278] sm:$0xff]
        %v880 = vld [vmem:[%s748 + $0x280] sm:$0xff]
        %v881 = vld [vmem:[%s748 + $0x288] sm:$0xff]
        %v882 = vld [vmem:[%s748 + $0x290] sm:$0xff]
        %v883 = vld [vmem:[%s748 + $0x298] sm:$0xff]
        %v884 = vld [vmem:[%s748 + $0x2a0] sm:$0xff]
        %v885 = vld [vmem:[%s748 + $0x2a8] sm:$0xff]
        %v886 = vld [vmem:[%s748 + $0x2b0] sm:$0xff]
        %v887 = vld [vmem:[%s748 + $0x2b8] sm:$0xff]
        %v888 = vld [vmem:[%s748 + $0x2c0] sm:$0xff]
        %v889 = vld [vmem:[%s748 + $0x2c8] sm:$0xff]
        %v890 = vld [vmem:[%s748 + $0x2d0] sm:$0xff]
        %v891 = vld [vmem:[%s748 + $0x2d8] sm:$0xff]
        %v892 = vld [vmem:[%s748 + $0x2e0] sm:$0xff]
        %v893 = vld [vmem:[%s748 + $0x2e8] sm:$0xff]
        %v894 = vld [vmem:[%s748 + $0x2f0] sm:$0xff]
        %v895 = vld [vmem:[%s748 + $0x2f8] sm:$0xff]
        %v896 = vld [vmem:[%s748 + $0x300] sm:$0xff]
        %v897 = vld [vmem:[%s748 + $0x308] sm:$0xff]
        %v898 = vld [vmem:[%s748 + $0x310] sm:$0xff]
        %v899 = vld [vmem:[%s748 + $0x318] sm:$0xff]
        %v900 = vld [vmem:[%s748 + $0x320] sm:$0xff]
        %v901 = vld [vmem:[%s748 + $0x328] sm:$0xff]
        %v902 = vld [vmem:[%s748 + $0x330] sm:$0xff]
        %v903 = vld [vmem:[%s748 + $0x338] sm:$0xff]
        %v904 = vld [vmem:[%s748 + $0x340] sm:$0xff]
        %v905 = vld [vmem:[%s748 + $0x348] sm:$0xff]
        %v906 = vld [vmem:[%s748 + $0x350] sm:$0xff]
        %v907 = vld [vmem:[%s748 + $0x358] sm:$0xff]
        %v908 = vld [vmem:[%s748 + $0x360] sm:$0xff]
        %v909 = vld [vmem:[%s748 + $0x368] sm:$0xff]
        %v910 = vld [vmem:[%s748 + $0x370] sm:$0xff]
        %v911 = vld [vmem:[%s748 + $0x378] sm:$0xff]
        %v912 = vld [vmem:[%s748 + $0x380] sm:$0xff]
        %v913 = vld [vmem:[%s748 + $0x388] sm:$0xff]
        %v914 = vld [vmem:[%s748 + $0x390] sm:$0xff]
        %v915 = vld [vmem:[%s748 + $0x398] sm:$0xff]
        %v916 = vld [vmem:[%s748 + $0x3a0] sm:$0xff]
        %v917 = vld [vmem:[%s748 + $0x3a8] sm:$0xff]
        %v918 = vld [vmem:[%s748 + $0x3b0] sm:$0xff]
        %v919 = vld [vmem:[%s748 + $0x3b8] sm:$0xff]
        %v920 = vld [vmem:[%s748 + $0x3c0] sm:$0xff]
        %v921 = vld [vmem:[%s748 + $0x3c8] sm:$0xff]
        %v922 = vld [vmem:[%s748 + $0x3d0] sm:$0xff]
        %v923 = vld [vmem:[%s748 + $0x3d8] sm:$0xff]
        %v924 = vld [vmem:[%s748 + $0x3e0] sm:$0xff]
        %v925 = vld [vmem:[%s748 + $0x3e8] sm:$0xff]
        %v926 = vld [vmem:[%s748 + $0x3f0] sm:$0xff]
        %v927 = vld [vmem:[%s748 + $0x3f8] sm:$0xff]
        %v928 = vld [vmem:[%s787] sm:$0xff]
        %v929 = vld [vmem:[#allocation2] sm:$0xff]
        %v930 = vlaneseq
        %v931 = vshrl.u32 %v930, 7
        %v932 = vsub.s32 0, %v931
        %v933 = vrot.slane %v928, %v932
        %935 = vbcast.lane.b32.xlu0 %v933, 256
        %v936 = vpop.permute.xlu0 %935
        %s938 = sor.u32 256, 8
        %939 = vbcast.lane.b32.xlu0 %v933, %s938
        %v940 = vpop.permute.xlu0 %939
        %s942 = sor.u32 256, 16
        %943 = vbcast.lane.b32.xlu0 %v933, %s942
        %v944 = vpop.permute.xlu0 %943
        %s946 = sor.u32 256, 24
        %947 = vbcast.lane.b32.xlu0 %v933, %s946
        %v948 = vpop.permute.xlu0 %947
        %s950 = sor.u32 256, 32
        %951 = vbcast.lane.b32.xlu0 %v933, %s950
        %v952 = vpop.permute.xlu0 %951
        %s954 = sor.u32 256, 40
        %955 = vbcast.lane.b32.xlu0 %v933, %s954
        %v956 = vpop.permute.xlu0 %955
        %s958 = sor.u32 256, 48
        %959 = vbcast.lane.b32.xlu0 %v933, %s958
        %v960 = vpop.permute.xlu0 %959
        %s962 = sor.u32 256, 56
        %963 = vbcast.lane.b32.xlu0 %v933, %s962
        %v964 = vpop.permute.xlu0 %963
        %s966 = sor.u32 256, 64
        %967 = vbcast.lane.b32.xlu0 %v933, %s966
        %v968 = vpop.permute.xlu0 %967
        %s970 = sor.u32 256, 72
        %971 = vbcast.lane.b32.xlu0 %v933, %s970
        %v972 = vpop.permute.xlu0 %971
        %s974 = sor.u32 256, 80
        %975 = vbcast.lane.b32.xlu0 %v933, %s974
        %v976 = vpop.permute.xlu0 %975
        %s978 = sor.u32 256, 88
        %979 = vbcast.lane.b32.xlu0 %v933, %s978
        %v980 = vpop.permute.xlu0 %979
        %s982 = sor.u32 256, 96
        %983 = vbcast.lane.b32.xlu0 %v933, %s982
        %v984 = vpop.permute.xlu0 %983
        %s986 = sor.u32 256, 104
        %987 = vbcast.lane.b32.xlu0 %v933, %s986
        %v988 = vpop.permute.xlu0 %987
        %s990 = sor.u32 256, 112
        %991 = vbcast.lane.b32.xlu0 %v933, %s990
        %v992 = vpop.permute.xlu0 %991
        %s994 = sor.u32 256, 120
        %995 = vbcast.lane.b32.xlu0 %v933, %s994
        %v996 = vpop.permute.xlu0 %995
        %v997 = vlaneseq
        %v998 = vshrl.u32 %v997, 7
        %v999 = vsub.s32 1, %v998
        %v1000 = vrot.slane %v928, %v999
        %1002 = vbcast.lane.b32.xlu0 %v1000, 256
        %v1003 = vpop.permute.xlu0 %1002
        %s1005 = sor.u32 256, 8
        %1006 = vbcast.lane.b32.xlu0 %v1000, %s1005
        %v1007 = vpop.permute.xlu0 %1006
        %s1009 = sor.u32 256, 16
        %1010 = vbcast.lane.b32.xlu0 %v1000, %s1009
        %v1011 = vpop.permute.xlu0 %1010
        %s1013 = sor.u32 256, 24
        %1014 = vbcast.lane.b32.xlu0 %v1000, %s1013
        %v1015 = vpop.permute.xlu0 %1014
        %s1017 = sor.u32 256, 32
        %1018 = vbcast.lane.b32.xlu0 %v1000, %s1017
        %v1019 = vpop.permute.xlu0 %1018
        %s1021 = sor.u32 256, 40
        %1022 = vbcast.lane.b32.xlu0 %v1000, %s1021
        %v1023 = vpop.permute.xlu0 %1022
        %s1025 = sor.u32 256, 48
        %1026 = vbcast.lane.b32.xlu0 %v1000, %s1025
        %v1027 = vpop.permute.xlu0 %1026
        %s1029 = sor.u32 256, 56
        %1030 = vbcast.lane.b32.xlu0 %v1000, %s1029
        %v1031 = vpop.permute.xlu0 %1030
        %s1033 = sor.u32 256, 64
        %1034 = vbcast.lane.b32.xlu0 %v1000, %s1033
        %v1035 = vpop.permute.xlu0 %1034
        %s1037 = sor.u32 256, 72
        %1038 = vbcast.lane.b32.xlu0 %v1000, %s1037
        %v1039 = vpop.permute.xlu0 %1038
        %s1041 = sor.u32 256, 80
        %1042 = vbcast.lane.b32.xlu0 %v1000, %s1041
        %v1043 = vpop.permute.xlu0 %1042
        %s1045 = sor.u32 256, 88
        %1046 = vbcast.lane.b32.xlu0 %v1000, %s1045
        %v1047 = vpop.permute.xlu0 %1046
        %s1049 = sor.u32 256, 96
        %1050 = vbcast.lane.b32.xlu0 %v1000, %s1049
        %v1051 = vpop.permute.xlu0 %1050
        %s1053 = sor.u32 256, 104
        %1054 = vbcast.lane.b32.xlu0 %v1000, %s1053
        %v1055 = vpop.permute.xlu0 %1054
        %s1057 = sor.u32 256, 112
        %1058 = vbcast.lane.b32.xlu0 %v1000, %s1057
        %v1059 = vpop.permute.xlu0 %1058
        %s1061 = sor.u32 256, 120
        %1062 = vbcast.lane.b32.xlu0 %v1000, %s1061
        %v1063 = vpop.permute.xlu0 %1062
        %v1064 = vlaneseq
        %v1065 = vshrl.u32 %v1064, 7
        %v1066 = vsub.s32 2, %v1065
        %v1067 = vrot.slane %v928, %v1066
        %1069 = vbcast.lane.b32.xlu0 %v1067, 256
        %v1070 = vpop.permute.xlu0 %1069
        %s1072 = sor.u32 256, 8
        %1073 = vbcast.lane.b32.xlu0 %v1067, %s1072
        %v1074 = vpop.permute.xlu0 %1073
        %s1076 = sor.u32 256, 16
        %1077 = vbcast.lane.b32.xlu0 %v1067, %s1076
        %v1078 = vpop.permute.xlu0 %1077
        %s1080 = sor.u32 256, 24
        %1081 = vbcast.lane.b32.xlu0 %v1067, %s1080
        %v1082 = vpop.permute.xlu0 %1081
        %s1084 = sor.u32 256, 32
        %1085 = vbcast.lane.b32.xlu0 %v1067, %s1084
        %v1086 = vpop.permute.xlu0 %1085
        %s1088 = sor.u32 256, 40
        %1089 = vbcast.lane.b32.xlu0 %v1067, %s1088
        %v1090 = vpop.permute.xlu0 %1089
        %s1092 = sor.u32 256, 48
        %1093 = vbcast.lane.b32.xlu0 %v1067, %s1092
        %v1094 = vpop.permute.xlu0 %1093
        %s1096 = sor.u32 256, 56
        %1097 = vbcast.lane.b32.xlu0 %v1067, %s1096
        %v1098 = vpop.permute.xlu0 %1097
        %s1100 = sor.u32 256, 64
        %1101 = vbcast.lane.b32.xlu0 %v1067, %s1100
        %v1102 = vpop.permute.xlu0 %1101
        %s1104 = sor.u32 256, 72
        %1105 = vbcast.lane.b32.xlu0 %v1067, %s1104
        %v1106 = vpop.permute.xlu0 %1105
        %s1108 = sor.u32 256, 80
        %1109 = vbcast.lane.b32.xlu0 %v1067, %s1108
        %v1110 = vpop.permute.xlu0 %1109
        %s1112 = sor.u32 256, 88
        %1113 = vbcast.lane.b32.xlu0 %v1067, %s1112
        %v1114 = vpop.permute.xlu0 %1113
        %s1116 = sor.u32 256, 96
        %1117 = vbcast.lane.b32.xlu0 %v1067, %s1116
        %v1118 = vpop.permute.xlu0 %1117
        %s1120 = sor.u32 256, 104
        %1121 = vbcast.lane.b32.xlu0 %v1067, %s1120
        %v1122 = vpop.permute.xlu0 %1121
        %s1124 = sor.u32 256, 112
        %1125 = vbcast.lane.b32.xlu0 %v1067, %s1124
        %v1126 = vpop.permute.xlu0 %1125
        %s1128 = sor.u32 256, 120
        %1129 = vbcast.lane.b32.xlu0 %v1067, %s1128
        %v1130 = vpop.permute.xlu0 %1129
        %v1131 = vlaneseq
        %v1132 = vshrl.u32 %v1131, 7
        %v1133 = vsub.s32 3, %v1132
        %v1134 = vrot.slane %v928, %v1133
        %1136 = vbcast.lane.b32.xlu0 %v1134, 256
        %v1137 = vpop.permute.xlu0 %1136
        %s1139 = sor.u32 256, 8
        %1140 = vbcast.lane.b32.xlu0 %v1134, %s1139
        %v1141 = vpop.permute.xlu0 %1140
        %s1143 = sor.u32 256, 16
        %1144 = vbcast.lane.b32.xlu0 %v1134, %s1143
        %v1145 = vpop.permute.xlu0 %1144
        %s1147 = sor.u32 256, 24
        %1148 = vbcast.lane.b32.xlu0 %v1134, %s1147
        %v1149 = vpop.permute.xlu0 %1148
        %s1151 = sor.u32 256, 32
        %1152 = vbcast.lane.b32.xlu0 %v1134, %s1151
        %v1153 = vpop.permute.xlu0 %1152
        %s1155 = sor.u32 256, 40
        %1156 = vbcast.lane.b32.xlu0 %v1134, %s1155
        %v1157 = vpop.permute.xlu0 %1156
        %s1159 = sor.u32 256, 48
        %1160 = vbcast.lane.b32.xlu0 %v1134, %s1159
        %v1161 = vpop.permute.xlu0 %1160
        %s1163 = sor.u32 256, 56
        %1164 = vbcast.lane.b32.xlu0 %v1134, %s1163
        %v1165 = vpop.permute.xlu0 %1164
        %s1167 = sor.u32 256, 64
        %1168 = vbcast.lane.b32.xlu0 %v1134, %s1167
        %v1169 = vpop.permute.xlu0 %1168
        %s1171 = sor.u32 256, 72
        %1172 = vbcast.lane.b32.xlu0 %v1134, %s1171
        %v1173 = vpop.permute.xlu0 %1172
        %s1175 = sor.u32 256, 80
        %1176 = vbcast.lane.b32.xlu0 %v1134, %s1175
        %v1177 = vpop.permute.xlu0 %1176
        %s1179 = sor.u32 256, 88
        %1180 = vbcast.lane.b32.xlu0 %v1134, %s1179
        %v1181 = vpop.permute.xlu0 %1180
        %s1183 = sor.u32 256, 96
        %1184 = vbcast.lane.b32.xlu0 %v1134, %s1183
        %v1185 = vpop.permute.xlu0 %1184
        %s1187 = sor.u32 256, 104
        %1188 = vbcast.lane.b32.xlu0 %v1134, %s1187
        %v1189 = vpop.permute.xlu0 %1188
        %s1191 = sor.u32 256, 112
        %1192 = vbcast.lane.b32.xlu0 %v1134, %s1191
        %v1193 = vpop.permute.xlu0 %1192
        %s1195 = sor.u32 256, 120
        %1196 = vbcast.lane.b32.xlu0 %v1134, %s1195
        %v1197 = vpop.permute.xlu0 %1196
        %v1198 = vlaneseq
        %v1199 = vshrl.u32 %v1198, 7
        %v1200 = vsub.s32 4, %v1199
        %v1201 = vrot.slane %v928, %v1200
        %1203 = vbcast.lane.b32.xlu0 %v1201, 256
        %v1204 = vpop.permute.xlu0 %1203
        %s1206 = sor.u32 256, 8
        %1207 = vbcast.lane.b32.xlu0 %v1201, %s1206
        %v1208 = vpop.permute.xlu0 %1207
        %s1210 = sor.u32 256, 16
        %1211 = vbcast.lane.b32.xlu0 %v1201, %s1210
        %v1212 = vpop.permute.xlu0 %1211
        %s1214 = sor.u32 256, 24
        %1215 = vbcast.lane.b32.xlu0 %v1201, %s1214
        %v1216 = vpop.permute.xlu0 %1215
        %s1218 = sor.u32 256, 32
        %1219 = vbcast.lane.b32.xlu0 %v1201, %s1218
        %v1220 = vpop.permute.xlu0 %1219
        %s1222 = sor.u32 256, 40
        %1223 = vbcast.lane.b32.xlu0 %v1201, %s1222
        %v1224 = vpop.permute.xlu0 %1223
        %s1226 = sor.u32 256, 48
        %1227 = vbcast.lane.b32.xlu0 %v1201, %s1226
        %v1228 = vpop.permute.xlu0 %1227
        %s1230 = sor.u32 256, 56
        %1231 = vbcast.lane.b32.xlu0 %v1201, %s1230
        %v1232 = vpop.permute.xlu0 %1231
        %s1234 = sor.u32 256, 64
        %1235 = vbcast.lane.b32.xlu0 %v1201, %s1234
        %v1236 = vpop.permute.xlu0 %1235
        %s1238 = sor.u32 256, 72
        %1239 = vbcast.lane.b32.xlu0 %v1201, %s1238
        %v1240 = vpop.permute.xlu0 %1239
        %s1242 = sor.u32 256, 80
        %1243 = vbcast.lane.b32.xlu0 %v1201, %s1242
        %v1244 = vpop.permute.xlu0 %1243
        %s1246 = sor.u32 256, 88
        %1247 = vbcast.lane.b32.xlu0 %v1201, %s1246
        %v1248 = vpop.permute.xlu0 %1247
        %s1250 = sor.u32 256, 96
        %1251 = vbcast.lane.b32.xlu0 %v1201, %s1250
        %v1252 = vpop.permute.xlu0 %1251
        %s1254 = sor.u32 256, 104
        %1255 = vbcast.lane.b32.xlu0 %v1201, %s1254
        %v1256 = vpop.permute.xlu0 %1255
        %s1258 = sor.u32 256, 112
        %1259 = vbcast.lane.b32.xlu0 %v1201, %s1258
        %v1260 = vpop.permute.xlu0 %1259
        %s1262 = sor.u32 256, 120
        %1263 = vbcast.lane.b32.xlu0 %v1201, %s1262
        %v1264 = vpop.permute.xlu0 %1263
        %v1265 = vlaneseq
        %v1266 = vshrl.u32 %v1265, 7
        %v1267 = vsub.s32 5, %v1266
        %v1268 = vrot.slane %v928, %v1267
        %1270 = vbcast.lane.b32.xlu0 %v1268, 256
        %v1271 = vpop.permute.xlu0 %1270
        %s1273 = sor.u32 256, 8
        %1274 = vbcast.lane.b32.xlu0 %v1268, %s1273
        %v1275 = vpop.permute.xlu0 %1274
        %s1277 = sor.u32 256, 16
        %1278 = vbcast.lane.b32.xlu0 %v1268, %s1277
        %v1279 = vpop.permute.xlu0 %1278
        %s1281 = sor.u32 256, 24
        %1282 = vbcast.lane.b32.xlu0 %v1268, %s1281
        %v1283 = vpop.permute.xlu0 %1282
        %s1285 = sor.u32 256, 32
        %1286 = vbcast.lane.b32.xlu0 %v1268, %s1285
        %v1287 = vpop.permute.xlu0 %1286
        %s1289 = sor.u32 256, 40
        %1290 = vbcast.lane.b32.xlu0 %v1268, %s1289
        %v1291 = vpop.permute.xlu0 %1290
        %s1293 = sor.u32 256, 48
        %1294 = vbcast.lane.b32.xlu0 %v1268, %s1293
        %v1295 = vpop.permute.xlu0 %1294
        %s1297 = sor.u32 256, 56
        %1298 = vbcast.lane.b32.xlu0 %v1268, %s1297
        %v1299 = vpop.permute.xlu0 %1298
        %s1301 = sor.u32 256, 64
        %1302 = vbcast.lane.b32.xlu0 %v1268, %s1301
        %v1303 = vpop.permute.xlu0 %1302
        %s1305 = sor.u32 256, 72
        %1306 = vbcast.lane.b32.xlu0 %v1268, %s1305
        %v1307 = vpop.permute.xlu0 %1306
        %s1309 = sor.u32 256, 80
        %1310 = vbcast.lane.b32.xlu0 %v1268, %s1309
        %v1311 = vpop.permute.xlu0 %1310
        %s1313 = sor.u32 256, 88
        %1314 = vbcast.lane.b32.xlu0 %v1268, %s1313
        %v1315 = vpop.permute.xlu0 %1314
        %s1317 = sor.u32 256, 96
        %1318 = vbcast.lane.b32.xlu0 %v1268, %s1317
        %v1319 = vpop.permute.xlu0 %1318
        %s1321 = sor.u32 256, 104
        %1322 = vbcast.lane.b32.xlu0 %v1268, %s1321
        %v1323 = vpop.permute.xlu0 %1322
        %s1325 = sor.u32 256, 112
        %1326 = vbcast.lane.b32.xlu0 %v1268, %s1325
        %v1327 = vpop.permute.xlu0 %1326
        %s1329 = sor.u32 256, 120
        %1330 = vbcast.lane.b32.xlu0 %v1268, %s1329
        %v1331 = vpop.permute.xlu0 %1330
        %v1332 = vlaneseq
        %v1333 = vshrl.u32 %v1332, 7
        %v1334 = vsub.s32 6, %v1333
        %v1335 = vrot.slane %v928, %v1334
        %1337 = vbcast.lane.b32.xlu0 %v1335, 256
        %v1338 = vpop.permute.xlu0 %1337
        %s1340 = sor.u32 256, 8
        %1341 = vbcast.lane.b32.xlu0 %v1335, %s1340
        %v1342 = vpop.permute.xlu0 %1341
        %s1344 = sor.u32 256, 16
        %1345 = vbcast.lane.b32.xlu0 %v1335, %s1344
        %v1346 = vpop.permute.xlu0 %1345
        %s1348 = sor.u32 256, 24
        %1349 = vbcast.lane.b32.xlu0 %v1335, %s1348
        %v1350 = vpop.permute.xlu0 %1349
        %s1352 = sor.u32 256, 32
        %1353 = vbcast.lane.b32.xlu0 %v1335, %s1352
        %v1354 = vpop.permute.xlu0 %1353
        %s1356 = sor.u32 256, 40
        %1357 = vbcast.lane.b32.xlu0 %v1335, %s1356
        %v1358 = vpop.permute.xlu0 %1357
        %s1360 = sor.u32 256, 48
        %1361 = vbcast.lane.b32.xlu0 %v1335, %s1360
        %v1362 = vpop.permute.xlu0 %1361
        %s1364 = sor.u32 256, 56
        %1365 = vbcast.lane.b32.xlu0 %v1335, %s1364
        %v1366 = vpop.permute.xlu0 %1365
        %s1368 = sor.u32 256, 64
        %1369 = vbcast.lane.b32.xlu0 %v1335, %s1368
        %v1370 = vpop.permute.xlu0 %1369
        %s1372 = sor.u32 256, 72
        %1373 = vbcast.lane.b32.xlu0 %v1335, %s1372
        %v1374 = vpop.permute.xlu0 %1373
        %s1376 = sor.u32 256, 80
        %1377 = vbcast.lane.b32.xlu0 %v1335, %s1376
        %v1378 = vpop.permute.xlu0 %1377
        %s1380 = sor.u32 256, 88
        %1381 = vbcast.lane.b32.xlu0 %v1335, %s1380
        %v1382 = vpop.permute.xlu0 %1381
        %s1384 = sor.u32 256, 96
        %1385 = vbcast.lane.b32.xlu0 %v1335, %s1384
        %v1386 = vpop.permute.xlu0 %1385
        %s1388 = sor.u32 256, 104
        %1389 = vbcast.lane.b32.xlu0 %v1335, %s1388
        %v1390 = vpop.permute.xlu0 %1389
        %s1392 = sor.u32 256, 112
        %1393 = vbcast.lane.b32.xlu0 %v1335, %s1392
        %v1394 = vpop.permute.xlu0 %1393
        %s1396 = sor.u32 256, 120
        %1397 = vbcast.lane.b32.xlu0 %v1335, %s1396
        %v1398 = vpop.permute.xlu0 %1397
        %v1399 = vlaneseq
        %v1400 = vshrl.u32 %v1399, 7
        %v1401 = vsub.s32 7, %v1400
        %v1402 = vrot.slane %v928, %v1401
        %1404 = vbcast.lane.b32.xlu0 %v1402, 256
        %v1405 = vpop.permute.xlu0 %1404
        %s1407 = sor.u32 256, 8
        %1408 = vbcast.lane.b32.xlu0 %v1402, %s1407
        %v1409 = vpop.permute.xlu0 %1408
        %s1411 = sor.u32 256, 16
        %1412 = vbcast.lane.b32.xlu0 %v1402, %s1411
        %v1413 = vpop.permute.xlu0 %1412
        %s1415 = sor.u32 256, 24
        %1416 = vbcast.lane.b32.xlu0 %v1402, %s1415
        %v1417 = vpop.permute.xlu0 %1416
        %s1419 = sor.u32 256, 32
        %1420 = vbcast.lane.b32.xlu0 %v1402, %s1419
        %v1421 = vpop.permute.xlu0 %1420
        %s1423 = sor.u32 256, 40
        %1424 = vbcast.lane.b32.xlu0 %v1402, %s1423
        %v1425 = vpop.permute.xlu0 %1424
        %s1427 = sor.u32 256, 48
        %1428 = vbcast.lane.b32.xlu0 %v1402, %s1427
        %v1429 = vpop.permute.xlu0 %1428
        %s1431 = sor.u32 256, 56
        %1432 = vbcast.lane.b32.xlu0 %v1402, %s1431
        %v1433 = vpop.permute.xlu0 %1432
        %s1435 = sor.u32 256, 64
        %1436 = vbcast.lane.b32.xlu0 %v1402, %s1435
        %v1437 = vpop.permute.xlu0 %1436
        %s1439 = sor.u32 256, 72
        %1440 = vbcast.lane.b32.xlu0 %v1402, %s1439
        %v1441 = vpop.permute.xlu0 %1440
        %s1443 = sor.u32 256, 80
        %1444 = vbcast.lane.b32.xlu0 %v1402, %s1443
        %v1445 = vpop.permute.xlu0 %1444
        %s1447 = sor.u32 256, 88
        %1448 = vbcast.lane.b32.xlu0 %v1402, %s1447
        %v1449 = vpop.permute.xlu0 %1448
        %s1451 = sor.u32 256, 96
        %1452 = vbcast.lane.b32.xlu0 %v1402, %s1451
        %v1453 = vpop.permute.xlu0 %1452
        %s1455 = sor.u32 256, 104
        %1456 = vbcast.lane.b32.xlu0 %v1402, %s1455
        %v1457 = vpop.permute.xlu0 %1456
        %s1459 = sor.u32 256, 112
        %1460 = vbcast.lane.b32.xlu0 %v1402, %s1459
        %v1461 = vpop.permute.xlu0 %1460
        %s1463 = sor.u32 256, 120
        %1464 = vbcast.lane.b32.xlu0 %v1402, %s1463
        %v1465 = vpop.permute.xlu0 %1464
        %v1466 = vmul.f32 %v800, %v936
        %v1467 = vmul.f32 %v801, %v940
        %v1468 = vmul.f32 %v802, %v944
        %v1469 = vmul.f32 %v803, %v948
        %v1470 = vmul.f32 %v804, %v952
        %v1471 = vmul.f32 %v805, %v956
        %v1472 = vmul.f32 %v806, %v960
        %v1473 = vmul.f32 %v807, %v964
        %v1474 = vmul.f32 %v808, %v968
        %v1475 = vmul.f32 %v809, %v972
        %v1476 = vmul.f32 %v810, %v976
        %v1477 = vmul.f32 %v811, %v980
        %v1478 = vmul.f32 %v812, %v984
        %v1479 = vmul.f32 %v813, %v988
        %v1480 = vmul.f32 %v814, %v992
        %v1481 = vmul.f32 %v815, %v996
        %v1482 = vmul.f32 %v816, %v1003
        %v1483 = vmul.f32 %v817, %v1007
        %v1484 = vmul.f32 %v818, %v1011
        %v1485 = vmul.f32 %v819, %v1015
        %v1486 = vmul.f32 %v820, %v1019
        %v1487 = vmul.f32 %v821, %v1023
        %v1488 = vmul.f32 %v822, %v1027
        %v1489 = vmul.f32 %v823, %v1031
        %v1490 = vmul.f32 %v824, %v1035
        %v1491 = vmul.f32 %v825, %v1039
        %v1492 = vmul.f32 %v826, %v1043
        %v1493 = vmul.f32 %v827, %v1047
        %v1494 = vmul.f32 %v828, %v1051
        %v1495 = vmul.f32 %v829, %v1055
        %v1496 = vmul.f32 %v830, %v1059
        %v1497 = vmul.f32 %v831, %v1063
        %v1498 = vmul.f32 %v832, %v1070
        %v1499 = vmul.f32 %v833, %v1074
        %v1500 = vmul.f32 %v834, %v1078
        %v1501 = vmul.f32 %v835, %v1082
        %v1502 = vmul.f32 %v836, %v1086
        %v1503 = vmul.f32 %v837, %v1090
        %v1504 = vmul.f32 %v838, %v1094
        %v1505 = vmul.f32 %v839, %v1098
        %v1506 = vmul.f32 %v840, %v1102
        %v1507 = vmul.f32 %v841, %v1106
        %v1508 = vmul.f32 %v842, %v1110
        %v1509 = vmul.f32 %v843, %v1114
        %v1510 = vmul.f32 %v844, %v1118
        %v1511 = vmul.f32 %v845, %v1122
        %v1512 = vmul.f32 %v846, %v1126
        %v1513 = vmul.f32 %v847, %v1130
        %v1514 = vmul.f32 %v848, %v1137
        %v1515 = vmul.f32 %v849, %v1141
        %v1516 = vmul.f32 %v850, %v1145
        %v1517 = vmul.f32 %v851, %v1149
        %v1518 = vmul.f32 %v852, %v1153
        %v1519 = vmul.f32 %v853, %v1157
        %v1520 = vmul.f32 %v854, %v1161
        %v1521 = vmul.f32 %v855, %v1165
        %v1522 = vmul.f32 %v856, %v1169
        %v1523 = vmul.f32 %v857, %v1173
        %v1524 = vmul.f32 %v858, %v1177
        %v1525 = vmul.f32 %v859, %v1181
        %v1526 = vmul.f32 %v860, %v1185
        %v1527 = vmul.f32 %v861, %v1189
        %v1528 = vmul.f32 %v862, %v1193
        %v1529 = vmul.f32 %v863, %v1197
        %v1530 = vmul.f32 %v864, %v1204
        %v1531 = vmul.f32 %v865, %v1208
        %v1532 = vmul.f32 %v866, %v1212
        %v1533 = vmul.f32 %v867, %v1216
        %v1534 = vmul.f32 %v868, %v1220
        %v1535 = vmul.f32 %v869, %v1224
        %v1536 = vmul.f32 %v870, %v1228
        %v1537 = vmul.f32 %v871, %v1232
        %v1538 = vmul.f32 %v872, %v1236
        %v1539 = vmul.f32 %v873, %v1240
        %v1540 = vmul.f32 %v874, %v1244
        %v1541 = vmul.f32 %v875, %v1248
        %v1542 = vmul.f32 %v876, %v1252
        %v1543 = vmul.f32 %v877, %v1256
        %v1544 = vmul.f32 %v878, %v1260
        %v1545 = vmul.f32 %v879, %v1264
        %v1546 = vmul.f32 %v880, %v1271
        %v1547 = vmul.f32 %v881, %v1275
        %v1548 = vmul.f32 %v882, %v1279
        %v1549 = vmul.f32 %v883, %v1283
        %v1550 = vmul.f32 %v884, %v1287
        %v1551 = vmul.f32 %v885, %v1291
        %v1552 = vmul.f32 %v886, %v1295
        %v1553 = vmul.f32 %v887, %v1299
        %v1554 = vmul.f32 %v888, %v1303
        %v1555 = vmul.f32 %v889, %v1307
        %v1556 = vmul.f32 %v890, %v1311
        %v1557 = vmul.f32 %v891, %v1315
        %v1558 = vmul.f32 %v892, %v1319
        %v1559 = vmul.f32 %v893, %v1323
        %v1560 = vmul.f32 %v894, %v1327
        %v1561 = vmul.f32 %v895, %v1331
        %v1562 = vmul.f32 %v896, %v1338
        %v1563 = vmul.f32 %v897, %v1342
        %v1564 = vmul.f32 %v898, %v1346
        %v1565 = vmul.f32 %v899, %v1350
        %v1566 = vmul.f32 %v900, %v1354
        %v1567 = vmul.f32 %v901, %v1358
        %v1568 = vmul.f32 %v902, %v1362
        %v1569 = vmul.f32 %v903, %v1366
        %v1570 = vmul.f32 %v904, %v1370
        %v1571 = vmul.f32 %v905, %v1374
        %v1572 = vmul.f32 %v906, %v1378
        %v1573 = vmul.f32 %v907, %v1382
        %v1574 = vmul.f32 %v908, %v1386
        %v1575 = vmul.f32 %v909, %v1390
        %v1576 = vmul.f32 %v910, %v1394
        %v1577 = vmul.f32 %v911, %v1398
        %v1578 = vmul.f32 %v912, %v1405
        %v1579 = vmul.f32 %v913, %v1409
        %v1580 = vmul.f32 %v914, %v1413
        %v1581 = vmul.f32 %v915, %v1417
        %v1582 = vmul.f32 %v916, %v1421
        %v1583 = vmul.f32 %v917, %v1425
        %v1584 = vmul.f32 %v918, %v1429
        %v1585 = vmul.f32 %v919, %v1433
        %v1586 = vmul.f32 %v920, %v1437
        %v1587 = vmul.f32 %v921, %v1441
        %v1588 = vmul.f32 %v922, %v1445
        %v1589 = vmul.f32 %v923, %v1449
        %v1590 = vmul.f32 %v924, %v1453
        %v1591 = vmul.f32 %v925, %v1457
        %v1592 = vmul.f32 %v926, %v1461
        %v1593 = vmul.f32 %v927, %v1465
        %vm1594 = vcmask 261120
        %v1595 = vsel %vm1594, %v1466, 0.0
        %v1596 = vsel %vm1594, %v1467, 0.0
        %v1597 = vadd.f32 %v1595, %v1596
        %v1598 = vsel %vm1594, %v1468, 0.0
        %v1599 = vadd.f32 %v1597, %v1598
        %v1600 = vsel %vm1594, %v1469, 0.0
        %v1601 = vadd.f32 %v1599, %v1600
        %v1602 = vsel %vm1594, %v1470, 0.0
        %v1603 = vadd.f32 %v1601, %v1602
        %v1604 = vsel %vm1594, %v1471, 0.0
        %v1605 = vadd.f32 %v1603, %v1604
        %v1606 = vsel %vm1594, %v1472, 0.0
        %v1607 = vadd.f32 %v1605, %v1606
        %v1608 = vsel %vm1594, %v1473, 0.0
        %v1609 = vadd.f32 %v1607, %v1608
        %v1610 = vsel %vm1594, %v1474, 0.0
        %v1611 = vadd.f32 %v1609, %v1610
        %v1612 = vsel %vm1594, %v1475, 0.0
        %v1613 = vadd.f32 %v1611, %v1612
        %v1614 = vsel %vm1594, %v1476, 0.0
        %v1615 = vadd.f32 %v1613, %v1614
        %v1616 = vsel %vm1594, %v1477, 0.0
        %v1617 = vadd.f32 %v1615, %v1616
        %v1618 = vsel %vm1594, %v1478, 0.0
        %v1619 = vadd.f32 %v1617, %v1618
        %v1620 = vsel %vm1594, %v1479, 0.0
        %v1621 = vadd.f32 %v1619, %v1620
        %v1622 = vsel %vm1594, %v1480, 0.0
        %v1623 = vadd.f32 %v1621, %v1622
        %v1624 = vsel %vm1594, %v1481, 0.0
        %v1625 = vadd.f32 %v1623, %v1624
        %v1626 = vrot.slane %v1625, 4
        %v1627 = vadd.f32 %v1625, %v1626
        %v1628 = vrot.slane %v1627, 2
        %v1629 = vadd.f32 %v1627, %v1628
        %v1630 = vrot.slane %v1629, 1
        %v1631 = vadd.f32 %v1629, %v1630
        %v1632 = vsel %vm1594, %v1482, 0.0
        %v1633 = vsel %vm1594, %v1483, 0.0
        %v1634 = vadd.f32 %v1632, %v1633
        %v1635 = vsel %vm1594, %v1484, 0.0
        %v1636 = vadd.f32 %v1634, %v1635
        %v1637 = vsel %vm1594, %v1485, 0.0
        %v1638 = vadd.f32 %v1636, %v1637
        %v1639 = vsel %vm1594, %v1486, 0.0
        %v1640 = vadd.f32 %v1638, %v1639
        %v1641 = vsel %vm1594, %v1487, 0.0
        %v1642 = vadd.f32 %v1640, %v1641
        %v1643 = vsel %vm1594, %v1488, 0.0
        %v1644 = vadd.f32 %v1642, %v1643
        %v1645 = vsel %vm1594, %v1489, 0.0
        %v1646 = vadd.f32 %v1644, %v1645
        %v1647 = vsel %vm1594, %v1490, 0.0
        %v1648 = vadd.f32 %v1646, %v1647
        %v1649 = vsel %vm1594, %v1491, 0.0
        %v1650 = vadd.f32 %v1648, %v1649
        %v1651 = vsel %vm1594, %v1492, 0.0
        %v1652 = vadd.f32 %v1650, %v1651
        %v1653 = vsel %vm1594, %v1493, 0.0
        %v1654 = vadd.f32 %v1652, %v1653
        %v1655 = vsel %vm1594, %v1494, 0.0
        %v1656 = vadd.f32 %v1654, %v1655
        %v1657 = vsel %vm1594, %v1495, 0.0
        %v1658 = vadd.f32 %v1656, %v1657
        %v1659 = vsel %vm1594, %v1496, 0.0
        %v1660 = vadd.f32 %v1658, %v1659
        %v1661 = vsel %vm1594, %v1497, 0.0
        %v1662 = vadd.f32 %v1660, %v1661
        %v1663 = vrot.slane %v1662, 4
        %v1664 = vadd.f32 %v1662, %v1663
        %v1665 = vrot.slane %v1664, 2
        %v1666 = vadd.f32 %v1664, %v1665
        %v1667 = vrot.slane %v1666, 1
        %v1668 = vadd.f32 %v1666, %v1667
        %v1669 = vsel %vm1594, %v1498, 0.0
        %v1670 = vsel %vm1594, %v1499, 0.0
        %v1671 = vadd.f32 %v1669, %v1670
        %v1672 = vsel %vm1594, %v1500, 0.0
        %v1673 = vadd.f32 %v1671, %v1672
        %v1674 = vsel %vm1594, %v1501, 0.0
        %v1675 = vadd.f32 %v1673, %v1674
        %v1676 = vsel %vm1594, %v1502, 0.0
        %v1677 = vadd.f32 %v1675, %v1676
        %v1678 = vsel %vm1594, %v1503, 0.0
        %v1679 = vadd.f32 %v1677, %v1678
        %v1680 = vsel %vm1594, %v1504, 0.0
        %v1681 = vadd.f32 %v1679, %v1680
        %v1682 = vsel %vm1594, %v1505, 0.0
        %v1683 = vadd.f32 %v1681, %v1682
        %v1684 = vsel %vm1594, %v1506, 0.0
        %v1685 = vadd.f32 %v1683, %v1684
        %v1686 = vsel %vm1594, %v1507, 0.0
        %v1687 = vadd.f32 %v1685, %v1686
        %v1688 = vsel %vm1594, %v1508, 0.0
        %v1689 = vadd.f32 %v1687, %v1688
        %v1690 = vsel %vm1594, %v1509, 0.0
        %v1691 = vadd.f32 %v1689, %v1690
        %v1692 = vsel %vm1594, %v1510, 0.0
        %v1693 = vadd.f32 %v1691, %v1692
        %v1694 = vsel %vm1594, %v1511, 0.0
        %v1695 = vadd.f32 %v1693, %v1694
        %v1696 = vsel %vm1594, %v1512, 0.0
        %v1697 = vadd.f32 %v1695, %v1696
        %v1698 = vsel %vm1594, %v1513, 0.0
        %v1699 = vadd.f32 %v1697, %v1698
        %v1700 = vrot.slane %v1699, 4
        %v1701 = vadd.f32 %v1699, %v1700
        %v1702 = vrot.slane %v1701, 2
        %v1703 = vadd.f32 %v1701, %v1702
        %v1704 = vrot.slane %v1703, 1
        %v1705 = vadd.f32 %v1703, %v1704
        %v1706 = vsel %vm1594, %v1514, 0.0
        %v1707 = vsel %vm1594, %v1515, 0.0
        %v1708 = vadd.f32 %v1706, %v1707
        %v1709 = vsel %vm1594, %v1516, 0.0
        %v1710 = vadd.f32 %v1708, %v1709
        %v1711 = vsel %vm1594, %v1517, 0.0
        %v1712 = vadd.f32 %v1710, %v1711
        %v1713 = vsel %vm1594, %v1518, 0.0
        %v1714 = vadd.f32 %v1712, %v1713
        %v1715 = vsel %vm1594, %v1519, 0.0
        %v1716 = vadd.f32 %v1714, %v1715
        %v1717 = vsel %vm1594, %v1520, 0.0
        %v1718 = vadd.f32 %v1716, %v1717
        %v1719 = vsel %vm1594, %v1521, 0.0
        %v1720 = vadd.f32 %v1718, %v1719
        %v1721 = vsel %vm1594, %v1522, 0.0
        %v1722 = vadd.f32 %v1720, %v1721
        %v1723 = vsel %vm1594, %v1523, 0.0
        %v1724 = vadd.f32 %v1722, %v1723
        %v1725 = vsel %vm1594, %v1524, 0.0
        %v1726 = vadd.f32 %v1724, %v1725
        %v1727 = vsel %vm1594, %v1525, 0.0
        %v1728 = vadd.f32 %v1726, %v1727
        %v1729 = vsel %vm1594, %v1526, 0.0
        %v1730 = vadd.f32 %v1728, %v1729
        %v1731 = vsel %vm1594, %v1527, 0.0
        %v1732 = vadd.f32 %v1730, %v1731
        %v1733 = vsel %vm1594, %v1528, 0.0
        %v1734 = vadd.f32 %v1732, %v1733
        %v1735 = vsel %vm1594, %v1529, 0.0
        %v1736 = vadd.f32 %v1734, %v1735
        %v1737 = vrot.slane %v1736, 4
        %v1738 = vadd.f32 %v1736, %v1737
        %v1739 = vrot.slane %v1738, 2
        %v1740 = vadd.f32 %v1738, %v1739
        %v1741 = vrot.slane %v1740, 1
        %v1742 = vadd.f32 %v1740, %v1741
        %v1743 = vsel %vm1594, %v1530, 0.0
        %v1744 = vsel %vm1594, %v1531, 0.0
        %v1745 = vadd.f32 %v1743, %v1744
        %v1746 = vsel %vm1594, %v1532, 0.0
        %v1747 = vadd.f32 %v1745, %v1746
        %v1748 = vsel %vm1594, %v1533, 0.0
        %v1749 = vadd.f32 %v1747, %v1748
        %v1750 = vsel %vm1594, %v1534, 0.0
        %v1751 = vadd.f32 %v1749, %v1750
        %v1752 = vsel %vm1594, %v1535, 0.0
        %v1753 = vadd.f32 %v1751, %v1752
        %v1754 = vsel %vm1594, %v1536, 0.0
        %v1755 = vadd.f32 %v1753, %v1754
        %v1756 = vsel %vm1594, %v1537, 0.0
        %v1757 = vadd.f32 %v1755, %v1756
        %v1758 = vsel %vm1594, %v1538, 0.0
        %v1759 = vadd.f32 %v1757, %v1758
        %v1760 = vsel %vm1594, %v1539, 0.0
        %v1761 = vadd.f32 %v1759, %v1760
        %v1762 = vsel %vm1594, %v1540, 0.0
        %v1763 = vadd.f32 %v1761, %v1762
        %v1764 = vsel %vm1594, %v1541, 0.0
        %v1765 = vadd.f32 %v1763, %v1764
        %v1766 = vsel %vm1594, %v1542, 0.0
        %v1767 = vadd.f32 %v1765, %v1766
        %v1768 = vsel %vm1594, %v1543, 0.0
        %v1769 = vadd.f32 %v1767, %v1768
        %v1770 = vsel %vm1594, %v1544, 0.0
        %v1771 = vadd.f32 %v1769, %v1770
        %v1772 = vsel %vm1594, %v1545, 0.0
        %v1773 = vadd.f32 %v1771, %v1772
        %v1774 = vrot.slane %v1773, 4
        %v1775 = vadd.f32 %v1773, %v1774
        %v1776 = vrot.slane %v1775, 2
        %v1777 = vadd.f32 %v1775, %v1776
        %v1778 = vrot.slane %v1777, 1
        %v1779 = vadd.f32 %v1777, %v1778
        %v1780 = vsel %vm1594, %v1546, 0.0
        %v1781 = vsel %vm1594, %v1547, 0.0
        %v1782 = vadd.f32 %v1780, %v1781
        %v1783 = vsel %vm1594, %v1548, 0.0
        %v1784 = vadd.f32 %v1782, %v1783
        %v1785 = vsel %vm1594, %v1549, 0.0
        %v1786 = vadd.f32 %v1784, %v1785
        %v1787 = vsel %vm1594, %v1550, 0.0
        %v1788 = vadd.f32 %v1786, %v1787
        %v1789 = vsel %vm1594, %v1551, 0.0
        %v1790 = vadd.f32 %v1788, %v1789
        %v1791 = vsel %vm1594, %v1552, 0.0
        %v1792 = vadd.f32 %v1790, %v1791
        %v1793 = vsel %vm1594, %v1553, 0.0
        %v1794 = vadd.f32 %v1792, %v1793
        %v1795 = vsel %vm1594, %v1554, 0.0
        %v1796 = vadd.f32 %v1794, %v1795
        %v1797 = vsel %vm1594, %v1555, 0.0
        %v1798 = vadd.f32 %v1796, %v1797
        %v1799 = vsel %vm1594, %v1556, 0.0
        %v1800 = vadd.f32 %v1798, %v1799
        %v1801 = vsel %vm1594, %v1557, 0.0
        %v1802 = vadd.f32 %v1800, %v1801
        %v1803 = vsel %vm1594, %v1558, 0.0
        %v1804 = vadd.f32 %v1802, %v1803
        %v1805 = vsel %vm1594, %v1559, 0.0
        %v1806 = vadd.f32 %v1804, %v1805
        %v1807 = vsel %vm1594, %v1560, 0.0
        %v1808 = vadd.f32 %v1806, %v1807
        %v1809 = vsel %vm1594, %v1561, 0.0
        %v1810 = vadd.f32 %v1808, %v1809
        %v1811 = vrot.slane %v1810, 4
        %v1812 = vadd.f32 %v1810, %v1811
        %v1813 = vrot.slane %v1812, 2
        %v1814 = vadd.f32 %v1812, %v1813
        %v1815 = vrot.slane %v1814, 1
        %v1816 = vadd.f32 %v1814, %v1815
        %v1817 = vsel %vm1594, %v1562, 0.0
        %v1818 = vsel %vm1594, %v1563, 0.0
        %v1819 = vadd.f32 %v1817, %v1818
        %v1820 = vsel %vm1594, %v1564, 0.0
        %v1821 = vadd.f32 %v1819, %v1820
        %v1822 = vsel %vm1594, %v1565, 0.0
        %v1823 = vadd.f32 %v1821, %v1822
        %v1824 = vsel %vm1594, %v1566, 0.0
        %v1825 = vadd.f32 %v1823, %v1824
        %v1826 = vsel %vm1594, %v1567, 0.0
        %v1827 = vadd.f32 %v1825, %v1826
        %v1828 = vsel %vm1594, %v1568, 0.0
        %v1829 = vadd.f32 %v1827, %v1828
        %v1830 = vsel %vm1594, %v1569, 0.0
        %v1831 = vadd.f32 %v1829, %v1830
        %v1832 = vsel %vm1594, %v1570, 0.0
        %v1833 = vadd.f32 %v1831, %v1832
        %v1834 = vsel %vm1594, %v1571, 0.0
        %v1835 = vadd.f32 %v1833, %v1834
        %v1836 = vsel %vm1594, %v1572, 0.0
        %v1837 = vadd.f32 %v1835, %v1836
        %v1838 = vsel %vm1594, %v1573, 0.0
        %v1839 = vadd.f32 %v1837, %v1838
        %v1840 = vsel %vm1594, %v1574, 0.0
        %v1841 = vadd.f32 %v1839, %v1840
        %v1842 = vsel %vm1594, %v1575, 0.0
        %v1843 = vadd.f32 %v1841, %v1842
        %v1844 = vsel %vm1594, %v1576, 0.0
        %v1845 = vadd.f32 %v1843, %v1844
        %v1846 = vsel %vm1594, %v1577, 0.0
        %v1847 = vadd.f32 %v1845, %v1846
        %v1848 = vrot.slane %v1847, 4
        %v1849 = vadd.f32 %v1847, %v1848
        %v1850 = vrot.slane %v1849, 2
        %v1851 = vadd.f32 %v1849, %v1850
        %v1852 = vrot.slane %v1851, 1
        %v1853 = vadd.f32 %v1851, %v1852
        %v1854 = vsel %vm1594, %v1578, 0.0
        %v1855 = vsel %vm1594, %v1579, 0.0
        %v1856 = vadd.f32 %v1854, %v1855
        %v1857 = vsel %vm1594, %v1580, 0.0
        %v1858 = vadd.f32 %v1856, %v1857
        %v1859 = vsel %vm1594, %v1581, 0.0
        %v1860 = vadd.f32 %v1858, %v1859
        %v1861 = vsel %vm1594, %v1582, 0.0
        %v1862 = vadd.f32 %v1860, %v1861
        %v1863 = vsel %vm1594, %v1583, 0.0
        %v1864 = vadd.f32 %v1862, %v1863
        %v1865 = vsel %vm1594, %v1584, 0.0
        %v1866 = vadd.f32 %v1864, %v1865
        %v1867 = vsel %vm1594, %v1585, 0.0
        %v1868 = vadd.f32 %v1866, %v1867
        %v1869 = vsel %vm1594, %v1586, 0.0
        %v1870 = vadd.f32 %v1868, %v1869
        %v1871 = vsel %vm1594, %v1587, 0.0
        %v1872 = vadd.f32 %v1870, %v1871
        %v1873 = vsel %vm1594, %v1588, 0.0
        %v1874 = vadd.f32 %v1872, %v1873
        %v1875 = vsel %vm1594, %v1589, 0.0
        %v1876 = vadd.f32 %v1874, %v1875
        %v1877 = vsel %vm1594, %v1590, 0.0
        %v1878 = vadd.f32 %v1876, %v1877
        %v1879 = vsel %vm1594, %v1591, 0.0
        %v1880 = vadd.f32 %v1878, %v1879
        %v1881 = vsel %vm1594, %v1592, 0.0
        %v1882 = vadd.f32 %v1880, %v1881
        %v1883 = vsel %vm1594, %v1593, 0.0
        %v1884 = vadd.f32 %v1882, %v1883
        %v1885 = vrot.slane %v1884, 4
        %v1886 = vadd.f32 %v1884, %v1885
        %v1887 = vrot.slane %v1886, 2
        %v1888 = vadd.f32 %v1886, %v1887
        %v1889 = vrot.slane %v1888, 1
        %v1890 = vadd.f32 %v1888, %v1889
        %vm1899 = vcmask 1041409
        %v1900 = vsel %vm1899, %v1668, %v1631
        %vm1901 = vcmask 1042434
        %v1902 = vsel %vm1901, %v1705, %v1900
        %vm1903 = vcmask 1043459
        %v1904 = vsel %vm1903, %v1742, %v1902
        %vm1905 = vcmask 1044484
        %v1906 = vsel %vm1905, %v1779, %v1904
        %vm1907 = vcmask 1045509
        %v1908 = vsel %vm1907, %v1816, %v1906
        %vm1909 = vcmask 1046534
        %v1910 = vsel %vm1909, %v1853, %v1908
        %vm1911 = vcmask 1047559
        %v1912 = vsel %vm1911, %v1890, %v1910
        %v1914 = vadd.f32 %v929, %v1912
        %1915 = vst.msk [vmem:[#allocation2] sm:$0xff] %vm1594, %v1914
        %v1916 = vld [vmem:[#allocation3] sm:$0xff]
        %1917 = vadd.xlane.f32.xlu0 %v928
        %v1918 = vpop.xlane.xlu0 %1917
        %v1919 = vadd.f32 %v1916, %v1918
        %vm1920 = vcmask 7168
        %1921 = vst.msk [vmem:[#allocation3] sm:$0xff] %vm1920, %v1919
        %p1922 = scmp.eq.s32.totalorder %s22, 1
        // Predicated region
        $region79: #{tpu_custom_call.1} parent=69 // pred_check
          %p1923 = pneg %p1922
        $region80: #{tpu_custom_call.1} parent=69 // pred_check_branch
          %1925 = sbr.rel (%p1923) target = $region82
        $region81: #{tpu_custom_call.1} parent=69 // pred_region
          %v1926 = vld [vmem:[#allocation2] sm:$0xff]
          %v1927 = vld [vmem:[#allocation3] sm:$0xff]
          %v1928 = vrcp.pop %v1927
          %1930 = vset.pattern.permute.xlu0 0
          %1931 = vperm.xlu0 %1930, %v1928
          %v1932 = vpop.permute.xlu0 %1931
          %v1934 = vmul.f32 %v1926, %v1932
          %v1936 = vcombine.high %v1934, %v1934
          %v1938 = vunpack.c.l.s4 1966171168
          %v1939 = vunpack.c.0.s8 %v1938
          %v1940 = vlaneseq
          %v1941 = vshrl.u32 %v1940, 7
          %v1942 = vsub.s32 %v1939, %v1941
          %v1943 = vrot.slane %v1934, %v1942
          %v1945 = vunpack.c.l.s4 1966171168
          %v1946 = vunpack.c.0.s8 %v1945
          %v1947 = vlaneseq
          %v1948 = vshrl.u32 %v1947, 7
          %v1949 = vsub.s32 %v1946, %v1948
          %v1950 = vrot.slane %v1936, %v1949
          %v1951 = vcombine.high %v1943, %v1943
          %v1952 = vcombine.high %v1950, %v1950
          %v1954 = vunpack.c.l.s4 1966171168
          %v1955 = vunpack.c.0.s8 %v1954
          %v1956 = vlaneseq
          %v1957 = vshrl.u32 %v1956, 7
          %v1958 = vsub.s32 %v1955, %v1957
          %v1959 = vrot.slane %v1943, %v1958
          %v1961 = vunpack.c.l.s4 1966171168
          %v1962 = vunpack.c.0.s8 %v1961
          %v1963 = vlaneseq
          %v1964 = vshrl.u32 %v1963, 7
          %v1965 = vsub.s32 %v1962, %v1964
          %v1966 = vrot.slane %v1950, %v1965
          %v1968 = vunpack.c.l.s4 1966171168
          %v1969 = vunpack.c.0.s8 %v1968
          %v1970 = vlaneseq
          %v1971 = vshrl.u32 %v1970, 7
          %v1972 = vsub.s32 %v1969, %v1971
          %v1973 = vrot.slane %v1951, %v1972
          %v1975 = vunpack.c.l.s4 1966171168
          %v1976 = vunpack.c.0.s8 %v1975
          %v1977 = vlaneseq
          %v1978 = vshrl.u32 %v1977, 7
          %v1979 = vsub.s32 %v1976, %v1978
          %v1980 = vrot.slane %v1952, %v1979
          %v1981 = vcombine.high %v1959, %v1959
          %v1982 = vcombine.high %v1966, %v1966
          %v1983 = vcombine.high %v1973, %v1973
          %v1984 = vcombine.high %v1980, %v1980
          %v1993 = vld [vmem:[%s2] sm:$0x1]
          %v1994 = vmul.f32 %v1959, %v1993
          %v1995 = vmul.f32 %v1973, %v1993
          %v1996 = vmul.f32 %v1981, %v1993
          %v1997 = vmul.f32 %v1983, %v1993
          %v1998 = vmul.f32 %v1966, %v1993
          %v1999 = vmul.f32 %v1980, %v1993
          %v2000 = vmul.f32 %v1982, %v1993
          %v2001 = vmul.f32 %v1984, %v1993
          %vm2002 = vcmask 253952
          %v2003 = vsel %vm2002, %v1994, 0.0
          %2004 = vadd.xlane.f32.xlu0 %v2003
          %v2005 = vpop.xlane.xlu0 %2004
          %v2006 = vsel %vm2002, %v1995, 0.0
          %2007 = vadd.xlane.f32.xlu0 %v2006
          %v2008 = vpop.xlane.xlu0 %2007
          %v2009 = vsel %vm2002, %v1996, 0.0
          %2010 = vadd.xlane.f32.xlu0 %v2009
          %v2011 = vpop.xlane.xlu0 %2010
          %v2012 = vsel %vm2002, %v1997, 0.0
          %2013 = vadd.xlane.f32.xlu0 %v2012
          %v2014 = vpop.xlane.xlu0 %2013
          %v2015 = vsel %vm2002, %v1998, 0.0
          %2016 = vadd.xlane.f32.xlu0 %v2015
          %v2017 = vpop.xlane.xlu0 %2016
          %v2018 = vsel %vm2002, %v1999, 0.0
          %2019 = vadd.xlane.f32.xlu0 %v2018
          %v2020 = vpop.xlane.xlu0 %2019
          %v2021 = vsel %vm2002, %v2000, 0.0
          %2022 = vadd.xlane.f32.xlu0 %v2021
          %v2023 = vpop.xlane.xlu0 %2022
          %v2024 = vsel %vm2002, %v2001, 0.0
          %2025 = vadd.xlane.f32.xlu0 %v2024
          %v2026 = vpop.xlane.xlu0 %2025
          %v2027 = vld [vmem:[#allocation4] sm:$0x1]
          %v2029 = vlaneseq
          %v2030 = vshrl.u32 %v2029, 7
          %v2031 = vsub.s32 0, %v2030
          %v2032 = vrot.slane %v2027, %v2031
          %2034 = vbcast.lane.b32.xlu0 %v2032, 256
          %v2035 = vpop.permute.xlu0 %2034
          %v2037 = vadd.f32 %v2005, %v2035
          %v2038 = vadd.f32 %v2008, %v2035
          %v2039 = vadd.f32 %v2011, %v2035
          %v2040 = vadd.f32 %v2014, %v2035
          %v2041 = vadd.f32 %v2017, %v2035
          %v2042 = vadd.f32 %v2020, %v2035
          %v2043 = vadd.f32 %v2023, %v2035
          %v2044 = vadd.f32 %v2026, %v2035
          %v2053 = vrot.slane %v2038, 7
          %v2054 = vsel %vm1899, %v2053, %v2037
          %v2055 = vrot.slane %v2039, 6
          %v2056 = vsel %vm1901, %v2055, %v2054
          %v2057 = vrot.slane %v2040, 5
          %v2058 = vsel %vm1903, %v2057, %v2056
          %v2059 = vrot.slane %v2041, 4
          %v2060 = vsel %vm1905, %v2059, %v2058
          %v2061 = vrot.slane %v2042, 3
          %v2062 = vsel %vm1907, %v2061, %v2060
          %v2063 = vrot.slane %v2043, 2
          %v2064 = vsel %vm1909, %v2063, %v2062
          %v2065 = vrot.slane %v2044, 1
          %v2066 = vsel %vm1911, %v2065, %v2064
          %2068 = vst.msk [vmem:[%s791] sm:$0xff] %vm1920, %v2066
        $region82: #{tpu_custom_call.1} parent=69 // pred_fallthru
          _
        %p2069 = scmp.lt.s32.totalorder %s21, 1
        %s2070 = scalar_select %p2069, %s21, 1
        %s2071 = smul.addr %s2070, 8
        %s2072 = scalar_lea.vmem %s4, %s2071
        // Predicated region
        $region83: #{tpu_custom_call.1} parent=69 // pred_check
          %p2073 = pneg %p145
        $region84: #{tpu_custom_call.1} parent=69 // pred_check_branch
          %2075 = sbr.rel (%p2073) target = $region86
        $region85: #{tpu_custom_call.1} parent=69 // pred_region
          _
        $region86: #{tpu_custom_call.1} parent=69 // pred_fallthru
          _
      $region70: #{tpu_custom_call.1} parent=5 // pred_fallthru
        _
      %p2076 = scmp.le.s32.totalorder 2, %s12
      // Predicated region
      $region87: #{tpu_custom_call.1} parent=5 // pred_check
        %p2077 = pneg %p2076
      $region88: #{tpu_custom_call.1} parent=5 // pred_check_branch
        %2079 = sbr.rel (%p2077) target = $region90
      $region89: #{tpu_custom_call.1} parent=5 // pred_region
        %s2080 = ssub.s32 %s12, 2
        // Predicated region
        $region91: #{tpu_custom_call.1} parent=89 // pred_check
          %p2081 = pneg %p151
        $region92: #{tpu_custom_call.1} parent=89 // pred_check_branch
          %2083 = sbr.rel (%p2081) target = $region94
        $region93: #{tpu_custom_call.1} parent=89 // pred_region
          %p2084 = scmp.lt.s32.totalorder %s23, 1
          %s2085 = scalar_select %p2084, %s23, 1
          %s2086 = smul.addr %s2085, 8
          %s2087 = scalar_lea.vmem %s4, %s2086
        $region94: #{tpu_custom_call.1} parent=89 // pred_fallthru
          _
      $region90: #{tpu_custom_call.1} parent=5 // pred_fallthru
        _
    $region6: #{tpu_custom_call.1} parent=1 // loop_footer
      %s16 = sadd.s32 1, %s12
    $region7: #{tpu_custom_call.1} parent=1 // loop_footer_branch
      %11 = sbr.rel target = $region3
    $region8: #{tpu_custom_call.1} parent=1 // loop_exit
      _

</llo_original>
